<compile_context>
chip_gen: v7x
topology: tpu7x:2x2x1
jax: 0.10.0
libtpu: 0.0.40
codegen_flags: <defaults>
</compile_context>

<pallas_src>
import jax
import jax.numpy as jnp
import numpy as np
from jax import lax
from jax.experimental import pallas as pl
from jax.experimental.pallas import tpu as pltpu

NEG_SLOPE = 0.01          # F.leaky_relu default negative_slope
DEFAULT_TILE_B = 2048     # big tiles: per-step overhead amortized, still tiny in VMEM


def _leaky_relu(x):
    return jnp.where(x > 0, x, NEG_SLOPE * x)


def _round_up(x, m):
    return (x + m - 1) // m * m


def dqn_kernel(x_ref, w1_ref, b1_ref, w2_ref, b2_ref, w3_ref, b3_ref, o_ref):
    # All operands f32; f32 accumulation on the MXU (HIGHEST precision keeps
    # parity with the PyTorch f32 reference — compute is not the bottleneck).
    x = x_ref[...]

    h1 = jnp.dot(x, w1_ref[...],
                 preferred_element_type=jnp.float32,
                 precision=lax.Precision.HIGHEST) + b1_ref[...]
    h1 = _leaky_relu(h1)

    h2 = jnp.dot(h1, w2_ref[...],
                 preferred_element_type=jnp.float32,
                 precision=lax.Precision.HIGHEST) + b2_ref[...]
    h2 = _leaky_relu(h2)

    out = jnp.dot(h2, w3_ref[...],
                  preferred_element_type=jnp.float32,
                  precision=lax.Precision.HIGHEST) + b3_ref[...]
    o_ref[...] = out.astype(o_ref.dtype)


def _choose_tile(B, desired):
    """Even batch tiles: multiple of 8 sublanes, padding waste < 8 rows,
    and >=2 grid steps for large B (so v7x megacore has work on both cores)."""
    n_tiles = max(1, pl.cdiv(B, desired))
    if B >= 1024 and n_tiles < 2:
        n_tiles = 2
    tile = _round_up(pl.cdiv(B, n_tiles), 8)
    return tile


def dqn_forward(x, params, tile_b=DEFAULT_TILE_B):
    """x: [B, n_observations] float32; params: dict of f32 W/b arrays.
    Returns [B, n_actions] float32 (same semantics as the PyTorch module)."""
    B, n_obs = x.shape
    hidden = params["w1"].shape[1]
    n_actions = params["w3"].shape[1]

    tile_b = _choose_tile(B, tile_b)
    b_pad = _round_up(B, tile_b)

    x_p = x.astype(jnp.float32)
    if b_pad != B:
        x_p = jnp.pad(x_p, ((0, b_pad - B), (0, 0)))

    w1 = params["w1"].astype(jnp.float32)
    b1 = params["b1"].astype(jnp.float32)
    w2 = params["w2"].astype(jnp.float32)
    b2 = params["b2"].astype(jnp.float32)
    w3 = params["w3"].astype(jnp.float32)
    b3 = params["b3"].astype(jnp.float32)

    grid = (b_pad // tile_b,)

    def resident(shape):
        # Full-array block, same block index every grid step -> stays VMEM-resident.
        return pl.BlockSpec(shape, lambda i: (0, 0))

    out = pl.pallas_call(
        dqn_kernel,
        out_shape=jax.ShapeDtypeStruct((b_pad, n_actions), jnp.float32),
        grid_spec=pltpu.PrefetchScalarGridSpec(
            num_scalar_prefetch=0,
            grid=grid,
            in_specs=[
                pl.BlockSpec((tile_b, n_obs), lambda i: (i, 0)),   # x (streamed)
                resident((n_obs, hidden)),     # w1
                resident((1, hidden)),         # b1
                resident((hidden, hidden)),    # w2
                resident((1, hidden)),         # b2
                resident((hidden, n_actions)), # w3
                resident((1, n_actions)),      # b3
            ],
            # Last dim == full array dim -> narrow (tile_b, n_actions) store is legal;
            # no 128-lane f32 output padding, no column slice afterwards.
            out_specs=pl.BlockSpec((tile_b, n_actions), lambda i: (i, 0)),
        ),
        compiler_params=pltpu.CompilerParams(
            dimension_semantics=("parallel",),   # megacore sharding of the batch axis
            vmem_limit_bytes=32 * 1024 * 1024,   # safe on v5e/v6e and v7x's 64 MiB VMEM
        ),
    )(x_p, w1, b1, w2, b2, w3, b3)

    if b_pad != B:
        out = out[:B]
    return out


def init_params(key, n_observations, n_actions, hidden=128):
    """Deterministic init mimicking nn.Linear's U(-1/sqrt(fan_in), 1/sqrt(fan_in))."""
    ks = jax.random.split(key, 6)

    def lin(kw, kb, fan_in, fan_out):
        bound = 1.0 / np.sqrt(fan_in)
        w = jax.random.uniform(kw, (fan_in, fan_out), jnp.float32, -bound, bound)
        b = jax.random.uniform(kb, (1, fan_out), jnp.float32, -bound, bound)
        return w, b

    w1, b1 = lin(ks[0], ks[1], n_observations, hidden)
    w2, b2 = lin(ks[2], ks[3], hidden, hidden)
    w3, b3 = lin(ks[4], ks[5], hidden, n_actions)
    return {"w1": w1, "b1": b1, "w2": w2, "b2": b2, "w3": w3, "b3": b3}


def dqn_reference(x, p):
    """Pure-JAX f32 reference (matches the PyTorch module)."""
    hi = lax.Precision.HIGHEST
    h1 = _leaky_relu(jnp.dot(x, p["w1"], precision=hi) + p["b1"])
    h2 = _leaky_relu(jnp.dot(h1, p["w2"], precision=hi) + p["b2"])
    return jnp.dot(h2, p["w3"], precision=hi) + p["b3"]


if __name__ == "__main__":
    key = jax.random.PRNGKey(0)
    k_x, k_p, k_x2 = jax.random.split(key, 3)

    n_observations = 8
    n_actions = 4
    params = init_params(k_p, n_observations, n_actions)

    # Small batch (exercises tile_b clamping to a multiple of 8 + row padding).
    batch = 2
    x = jax.random.normal(k_x, (batch, n_observations), jnp.float32)
    out = jax.block_until_ready(dqn_forward(x, params))
    ref = dqn_reference(x, params)
    np.testing.assert_allclose(np.asarray(out), np.asarray(ref), rtol=1e-4, atol=1e-4)
    assert out.shape == (batch, n_actions)

    # Batch that is not a multiple of 8 (exercises even-tile selection + row slice).
    batch2 = 130
    x2 = jax.random.normal(k_x2, (batch2, n_observations), jnp.float32)
    out2 = jax.block_until_ready(dqn_forward(x2, params))
    ref2 = dqn_reference(x2, params)
    np.testing.assert_allclose(np.asarray(out2), np.asarray(ref2), rtol=1e-4, atol=1e-4)
    assert out2.shape == (batch2, n_actions)

    print("KERNEL_OK")
</pallas_src>

<mosaic_0001>
module attributes {stable_mosaic.version = 11 : i64} {
  func.func @dqn_kernel(%arg0: i32, %arg1: memref<8x8xf32, #tpu.memory_space<vmem>>, %arg2: memref<8x128xf32, #tpu.memory_space<vmem>>, %arg3: memref<1x128xf32, #tpu.memory_space<vmem>>, %arg4: memref<128x128xf32, #tpu.memory_space<vmem>>, %arg5: memref<1x128xf32, #tpu.memory_space<vmem>>, %arg6: memref<128x4xf32, #tpu.memory_space<vmem>>, %arg7: memref<1x4xf32, #tpu.memory_space<vmem>>, %arg8: memref<8x4xf32, #tpu.memory_space<vmem>>) attributes {dimension_semantics = [#tpu.dimension_semantics<parallel>], iteration_bounds = array<i64: 1>, scalar_prefetch = 0 : i64, scratch_operands = 0 : i64, tpu.core_type = #tpu.core_type<tc>, window_params = [{transform_indices = @transform_0, window_bounds = array<i64: 8, 8>}, {pipeline_mode = #tpu.pipeline_mode<synchronous>, transform_indices = @transform_1, window_bounds = array<i64: 8, 128>}, {pipeline_mode = #tpu.pipeline_mode<synchronous>, transform_indices = @transform_2, window_bounds = array<i64: 1, 128>}, {pipeline_mode = #tpu.pipeline_mode<synchronous>, transform_indices = @transform_3, window_bounds = array<i64: 128, 128>}, {pipeline_mode = #tpu.pipeline_mode<synchronous>, transform_indices = @transform_4, window_bounds = array<i64: 1, 128>}, {pipeline_mode = #tpu.pipeline_mode<synchronous>, transform_indices = @transform_5, window_bounds = array<i64: 128, 4>}, {pipeline_mode = #tpu.pipeline_mode<synchronous>, transform_indices = @transform_6, window_bounds = array<i64: 1, 4>}, {transform_indices = @transform_7, window_bounds = array<i64: 8, 4>}]} {
    %c0 = arith.constant 0 : index
    %c0_0 = arith.constant 0 : index
    %0 = vector.load %arg1[%c0, %c0_0] : memref<8x8xf32, #tpu.memory_space<vmem>>, vector<8x8xf32>
    %c0_1 = arith.constant 0 : index
    %c0_2 = arith.constant 0 : index
    %1 = vector.load %arg2[%c0_1, %c0_2] : memref<8x128xf32, #tpu.memory_space<vmem>>, vector<8x128xf32>
    %cst = arith.constant dense<0.000000e+00> : vector<8x128xf32>
    %2 = tpu.matmul %0, %1, %cst {dimension_numbers = #tpu.dot_dimension_numbers<[1], [0], [0], [1], [0, 0, 1, 1], [], []>, precision = #tpu.contract_precision<fp32>} : vector<8x8xf32>, vector<8x128xf32>, vector<8x128xf32> -> vector<8x128xf32>
    %c0_3 = arith.constant 0 : index
    %c0_4 = arith.constant 0 : index
    %3 = vector.load %arg3[%c0_3, %c0_4] : memref<1x128xf32, #tpu.memory_space<vmem>>, vector<1x128xf32>
    %4 = vector.broadcast %3 : vector<1x128xf32> to vector<8x128xf32>
    %5 = arith.addf %2, %4 : vector<8x128xf32>
    %cst_5 = arith.constant 0.000000e+00 : f32
    %6 = vector.broadcast %cst_5 : f32 to vector<8x128xf32>
    %7 = arith.cmpf ogt, %5, %6 : vector<8x128xf32>
    %cst_6 = arith.constant 0.00999999977 : f32
    %8 = vector.broadcast %cst_6 : f32 to vector<8x128xf32>
    %9 = arith.mulf %8, %5 : vector<8x128xf32>
    %10 = arith.select %7, %5, %9 : vector<8x128xi1>, vector<8x128xf32>
    %c0_7 = arith.constant 0 : index
    %c0_8 = arith.constant 0 : index
    %11 = vector.load %arg4[%c0_7, %c0_8] : memref<128x128xf32, #tpu.memory_space<vmem>>, vector<128x128xf32>
    %cst_9 = arith.constant dense<0.000000e+00> : vector<8x128xf32>
    %12 = tpu.matmul %10, %11, %cst_9 {dimension_numbers = #tpu.dot_dimension_numbers<[1], [0], [0], [1], [0, 0, 1, 1], [], []>, precision = #tpu.contract_precision<fp32>} : vector<8x128xf32>, vector<128x128xf32>, vector<8x128xf32> -> vector<8x128xf32>
    %c0_10 = arith.constant 0 : index
    %c0_11 = arith.constant 0 : index
    %13 = vector.load %arg5[%c0_10, %c0_11] : memref<1x128xf32, #tpu.memory_space<vmem>>, vector<1x128xf32>
    %14 = vector.broadcast %13 : vector<1x128xf32> to vector<8x128xf32>
    %15 = arith.addf %12, %14 : vector<8x128xf32>
    %cst_12 = arith.constant 0.000000e+00 : f32
    %16 = vector.broadcast %cst_12 : f32 to vector<8x128xf32>
    %17 = arith.cmpf ogt, %15, %16 : vector<8x128xf32>
    %cst_13 = arith.constant 0.00999999977 : f32
    %18 = vector.broadcast %cst_13 : f32 to vector<8x128xf32>
    %19 = arith.mulf %18, %15 : vector<8x128xf32>
    %20 = arith.select %17, %15, %19 : vector<8x128xi1>, vector<8x128xf32>
    %c0_14 = arith.constant 0 : index
    %c0_15 = arith.constant 0 : index
    %21 = vector.load %arg6[%c0_14, %c0_15] : memref<128x4xf32, #tpu.memory_space<vmem>>, vector<128x4xf32>
    %cst_16 = arith.constant dense<0.000000e+00> : vector<8x4xf32>
    %22 = tpu.matmul %20, %21, %cst_16 {dimension_numbers = #tpu.dot_dimension_numbers<[1], [0], [0], [1], [0, 0, 1, 1], [], []>, precision = #tpu.contract_precision<fp32>} : vector<8x128xf32>, vector<128x4xf32>, vector<8x4xf32> -> vector<8x4xf32>
    %c0_17 = arith.constant 0 : index
    %c0_18 = arith.constant 0 : index
    %23 = vector.load %arg7[%c0_17, %c0_18] : memref<1x4xf32, #tpu.memory_space<vmem>>, vector<1x4xf32>
    %24 = vector.broadcast %23 : vector<1x4xf32> to vector<8x4xf32>
    %25 = arith.addf %22, %24 : vector<8x4xf32>
    %c0_19 = arith.constant 0 : index
    %c0_20 = arith.constant 0 : index
    %26 = vector.load %arg8[%c0_19, %c0_20] : memref<8x4xf32, #tpu.memory_space<vmem>>, vector<8x4xf32>
    tpu.vector_store %arg8[%c0_19, %c0_20], %25 {strides = array<i32>} : memref<8x4xf32, #tpu.memory_space<vmem>>, vector<8x4xf32>,
    return
  }
  func.func @transform_0(%arg0: i32) -> (i32, i32) {
    %c0_i32 = arith.constant 0 : i32
    %c0_i32_0 = arith.constant 0 : i32
    return %arg0, %c0_i32 : i32, i32
  }
  func.func @transform_1(%arg0: i32) -> (i32, i32) {
    %c0_i32 = arith.constant 0 : i32
    %c0_i32_0 = arith.constant 0 : i32
    %c0_i32_1 = arith.constant 0 : i32
    return %c0_i32, %c0_i32_0 : i32, i32
  }
  func.func @transform_2(%arg0: i32) -> (i32, i32) {
    %c0_i32 = arith.constant 0 : i32
    %c0_i32_0 = arith.constant 0 : i32
    %c0_i32_1 = arith.constant 0 : i32
    return %c0_i32, %c0_i32_0 : i32, i32
  }
  func.func @transform_3(%arg0: i32) -> (i32, i32) {
    %c0_i32 = arith.constant 0 : i32
    %c0_i32_0 = arith.constant 0 : i32
    %c0_i32_1 = arith.constant 0 : i32
    return %c0_i32, %c0_i32_0 : i32, i32
  }
  func.func @transform_4(%arg0: i32) -> (i32, i32) {
    %c0_i32 = arith.constant 0 : i32
    %c0_i32_0 = arith.constant 0 : i32
    %c0_i32_1 = arith.constant 0 : i32
    return %c0_i32, %c0_i32_0 : i32, i32
  }
  func.func @transform_5(%arg0: i32) -> (i32, i32) {
    %c0_i32 = arith.constant 0 : i32
    %c0_i32_0 = arith.constant 0 : i32
    %c0_i32_1 = arith.constant 0 : i32
    return %c0_i32, %c0_i32_0 : i32, i32
  }
  func.func @transform_6(%arg0: i32) -> (i32, i32) {
    %c0_i32 = arith.constant 0 : i32
    %c0_i32_0 = arith.constant 0 : i32
    %c0_i32_1 = arith.constant 0 : i32
    return %c0_i32, %c0_i32_0 : i32, i32
  }
  func.func @transform_7(%arg0: i32) -> (i32, i32) {
    %c0_i32 = arith.constant 0 : i32
    %c0_i32_0 = arith.constant 0 : i32
    return %arg0, %c0_i32 : i32, i32
  }
}

</mosaic_0001>

<llo_original>
// kernel: tpu_custom_call.1
$region0: #{tpu_custom_call.1}
  #allocation0 [shape = 'u32[]', space=smem, size = 0x4, offset = 0x4, fixed_abs, tag = 'smem constant byte address 0x4 - core index']
  #allocation1 [shape = 'u32[144,128]{1,0:T(1,128)}', space=vmem, size = 0x12000, scoped, tag = 'internal scratch']
  %s0 = inlined_call_operand.vmem [shape: f32[8,8], index: 0, kind: input, shape index: {}]
  %s1 = inlined_call_operand.hbm [shape: f32[8,128], index: 1, kind: input, shape index: {}]
  %s2 = inlined_call_operand.vmem [shape: f32[1,128], index: 2, kind: input, shape index: {}]
  %s3 = inlined_call_operand.vmem [shape: f32[128,128], index: 3, kind: input, shape index: {}]
  %s4 = inlined_call_operand.vmem [shape: f32[1,128], index: 4, kind: input, shape index: {}]
  %s5 = inlined_call_operand.vmem [shape: f32[128,4], index: 5, kind: input, shape index: {}]
  %s6 = inlined_call_operand.vmem [shape: f32[1,4], index: 6, kind: input, shape index: {}]
  %s7 = inlined_call_operand.vmem [shape: f32[8,4], index: 7, kind: output, shape index: {}]
  %s8 = sld [smem:[#allocation0]]
  $region42: #{tpu_custom_call.1} parent=0
    _
  %s10 = ssub.s32 1, %s8
  %s11 = scalar_select 0, %s10, %s8
  $region1: #{tpu_custom_call.1} parent=0
    #allocation2 [shape = 'u8[4096]{0}', space=vmem, size = 0x1000, scoped, tag = 'input window, operand 1, single buffered']
    #allocation3 [shape = 's32[1]{0}', space=sflag, size = 0x4, scoped, tag = 'scoped memory for tpu_custom_call.1']
    %12 = vsyncpa [#allocation3], 0
    // Predicated region
    $region2: #{tpu_custom_call.1} parent=1 // pred_check
      _
    $region3: #{tpu_custom_call.1} parent=1 // pred_check_branch
      %14 = sbr.rel (0) target = $region5
    $region4: #{tpu_custom_call.1} parent=1 // pred_region
      _
    $region5: #{tpu_custom_call.1} parent=1 // pred_fallthru
      _
    // Predicated region
    $region6: #{tpu_custom_call.1} parent=1 // pred_check
      _
    $region7: #{tpu_custom_call.1} parent=1 // pred_check_branch
      %16 = sbr.rel (0) target = $region9
    $region8: #{tpu_custom_call.1} parent=1 // pred_region
      %s18 = ssub.s32 128, 128
      %19 = vsyncadd [#allocation3], %s18
      %s21 = sshll.u32 [#allocation2], 4
      %s22 = int_to_ptr.vmem [resolvable:$true] %s21
      %24 = dma.hbm_to_vmem [thread:$0]  %s1, 128, %s22, [#allocation3]
    $region9: #{tpu_custom_call.1} parent=1 // pred_fallthru
      _
    // Predicated region
    $region10: #{tpu_custom_call.1} parent=1 // pred_check
      _
    $region11: #{tpu_custom_call.1} parent=1 // pred_check_branch
      %26 = sbr.rel (0) target = $region13
    $region12: #{tpu_custom_call.1} parent=1 // pred_region
      _
    $region13: #{tpu_custom_call.1} parent=1 // pred_fallthru
      _
    // Predicated region
    $region14: #{tpu_custom_call.1} parent=1 // pred_check
      _
    $region15: #{tpu_custom_call.1} parent=1 // pred_check_branch
      %28 = sbr.rel (0) target = $region17
    $region16: #{tpu_custom_call.1} parent=1 // pred_region
      _
    $region17: #{tpu_custom_call.1} parent=1 // pred_fallthru
      _
    // Predicated region
    $region18: #{tpu_custom_call.1} parent=1 // pred_check
      _
    $region19: #{tpu_custom_call.1} parent=1 // pred_check_branch
      %30 = sbr.rel (0) target = $region21
    $region20: #{tpu_custom_call.1} parent=1 // pred_region
      _
    $region21: #{tpu_custom_call.1} parent=1 // pred_fallthru
      _
    // Predicated region
    $region22: #{tpu_custom_call.1} parent=1 // pred_check
      _
    $region23: #{tpu_custom_call.1} parent=1 // pred_check_branch
      %32 = sbr.rel (0) target = $region25
    $region24: #{tpu_custom_call.1} parent=1 // pred_region
      _
    $region25: #{tpu_custom_call.1} parent=1 // pred_fallthru
      _
    // Predicated region
    $region26: #{tpu_custom_call.1} parent=1 // pred_check
      _
    $region27: #{tpu_custom_call.1} parent=1 // pred_check_branch
      %34 = sbr.rel (0) target = $region29
    $region28: #{tpu_custom_call.1} parent=1 // pred_region
      _
    $region29: #{tpu_custom_call.1} parent=1 // pred_fallthru
      _
    // Predicated region
    $region30: #{tpu_custom_call.1} parent=1 // pred_check
      _
    $region31: #{tpu_custom_call.1} parent=1 // pred_check_branch
      %36 = sbr.rel (0) target = $region33
    $region32: #{tpu_custom_call.1} parent=1 // pred_region
      %37 = dma.done [#allocation3], 128
    $region33: #{tpu_custom_call.1} parent=1 // pred_fallthru
      _
    %v38 = vld [vmem:[%s0] sm:$0xff]
    %v39 = vld [vmem:[#allocation2] sm:$0xff]
    %v40 = vld [vmem:[%s2] sm:$0x1]
    %v42 = vlaneseq
    %v43 = vshrl.u32 %v42, 7
    %v44 = vsub.s32 0, %v43
    %v45 = vrot.slane %v40, %v44
    %vm47 = vcmask 64512
    %v49 = vsel %vm47, %v38, 0
    %51 = vmatprep.subr.mxu0 0.0
    %v52 = vand.u32 %v39, 4294901760
    %53 = vmatpush1.msra.mxu0 %v52
    %54 = vmatprep.subr.mxu0 0.0
    %55 = vmatpush1.msra.mxu0 0.0
    %56 = vmatprep.subr.mxu0 0.0
    %57 = vmatpush1.msra.mxu0 0.0
    %58 = vmatprep.subr.mxu0 0.0
    %59 = vmatpush1.msra.mxu0 0.0
    %60 = vmatprep.subr.mxu0 0.0
    %61 = vmatpush1.msra.mxu0 0.0
    %62 = vmatprep.subr.mxu0 0.0
    %63 = vmatpush1.msra.mxu0 0.0
    %64 = vmatprep.subr.mxu0 0.0
    %65 = vmatpush1.msra.mxu0 0.0
    %66 = vmatprep.subr.mxu0 0.0
    %67 = vmatpush1.msra.mxu0 0.0
    %68 = vmatprep.subr.mxu0 0.0
    %69 = vmatpush1.msra.mxu0 0.0
    %70 = vmatprep.subr.mxu0 0.0
    %71 = vmatpush1.msra.mxu0 0.0
    %72 = vmatprep.subr.mxu0 0.0
    %73 = vmatpush1.msra.mxu0 0.0
    %74 = vmatprep.subr.mxu0 0.0
    %75 = vmatpush1.msra.mxu0 0.0
    %76 = vmatprep.subr.mxu0 0.0
    %77 = vmatpush1.msra.mxu0 0.0
    %78 = vmatprep.subr.mxu0 0.0
    %79 = vmatpush1.msra.mxu0 0.0
    %80 = vmatprep.subr.mxu0 0.0
    %81 = vmatpush1.msra.mxu0 0.0
    %82 = vmatprep.subr.mxu0 0.0
    %83 = vmatpush1.msra.mxu0 0.0
    %84 = vmatprep.subr.mxu0 0.0
    %85 = vmatpush1.msra.mxu0 0.0
    %86 = vmatprep.subr.mxu0 0.0
    %87 = vmatpush1.msra.mxu0 0.0
    %88 = vmatprep.subr.mxu0 0.0
    %89 = vmatpush1.msra.mxu0 0.0
    %90 = vmatprep.subr.mxu0 0.0
    %91 = vmatpush1.msra.mxu0 0.0
    %92 = vmatprep.subr.mxu0 0.0
    %93 = vmatpush1.msra.mxu0 0.0
    %94 = vmatprep.subr.mxu0 0.0
    %95 = vmatpush1.msra.mxu0 0.0
    %96 = vmatprep.subr.mxu0 0.0
    %97 = vmatpush1.msra.mxu0 0.0
    %98 = vmatprep.subr.mxu0 0.0
    %99 = vmatpush1.msra.mxu0 0.0
    %100 = vmatprep.subr.mxu0 0.0
    %101 = vmatpush1.msra.mxu0 0.0
    %102 = vmatprep.subr.mxu0 0.0
    %103 = vmatpush1.msra.mxu0 0.0
    %104 = vmatprep.subr.mxu0 0.0
    %105 = vmatpush1.msra.mxu0 0.0
    %106 = vmatprep.subr.mxu0 0.0
    %107 = vmatpush1.msra.mxu0 0.0
    %108 = vmatprep.subr.mxu0 0.0
    %109 = vmatpush1.msra.mxu0 0.0
    %110 = vmatprep.subr.mxu0 0.0
    %111 = vmatpush1.msra.mxu0 0.0
    %112 = vmatprep.subr.mxu0 0.0
    %113 = vmatpush1.msra.mxu0 0.0
    %114 = vmatprep.subr.mxu0 0.0
    %115 = vmatpush1.msra.mxu0 0.0
    %116 = vmatprep.mubr.f32.mxu0 0.0
    %v117 = vand.u32 %v49, 4294901760
    %v118 = vsub.f32 %v49, %v117
    %v119 = vand.u32 %v118, 4294901760
    %v120 = vsub.f32 %v118, %v119
    %v121 = vand.u32 %v120, 4294901760
    %122 = vmatmul.mubr.f32.gmra.mrb[0].mxu0 %v121
    %v123 = vpop.f32.mrb[0].mxu0
    %v124 = vadd.f32 %v45, %v123
    %v125 = vpop.f32.mrb[0].mxu0
    %126 = vdwg.mxu0
    %127 = vmatprep.subr.mxu0 0.0
    %v128 = vand.u32 %v39, 4294901760
    %v129 = vsub.f32 %v39, %v128
    %v130 = vand.u32 %v129, 4294901760
    %v131 = vsub.f32 %v129, %v130
    %v132 = vand.u32 %v131, 4294901760
    %133 = vmatpush1.msra.mxu0 %v132
    %134 = vmatprep.subr.mxu0 0.0
    %135 = vmatpush1.msra.mxu0 0.0
    %136 = vmatprep.subr.mxu0 0.0
    %137 = vmatpush1.msra.mxu0 0.0
    %138 = vmatprep.subr.mxu0 0.0
    %139 = vmatpush1.msra.mxu0 0.0
    %140 = vmatprep.subr.mxu0 0.0
    %141 = vmatpush1.msra.mxu0 0.0
    %142 = vmatprep.subr.mxu0 0.0
    %143 = vmatpush1.msra.mxu0 0.0
    %144 = vmatprep.subr.mxu0 0.0
    %145 = vmatpush1.msra.mxu0 0.0
    %146 = vmatprep.subr.mxu0 0.0
    %147 = vmatpush1.msra.mxu0 0.0
    %148 = vmatprep.subr.mxu0 0.0
    %149 = vmatpush1.msra.mxu0 0.0
    %150 = vmatprep.subr.mxu0 0.0
    %151 = vmatpush1.msra.mxu0 0.0
    %152 = vmatprep.subr.mxu0 0.0
    %153 = vmatpush1.msra.mxu0 0.0
    %154 = vmatprep.subr.mxu0 0.0
    %155 = vmatpush1.msra.mxu0 0.0
    %156 = vmatprep.subr.mxu0 0.0
    %157 = vmatpush1.msra.mxu0 0.0
    %158 = vmatprep.subr.mxu0 0.0
    %159 = vmatpush1.msra.mxu0 0.0
    %160 = vmatprep.subr.mxu0 0.0
    %161 = vmatpush1.msra.mxu0 0.0
    %162 = vmatprep.subr.mxu0 0.0
    %163 = vmatpush1.msra.mxu0 0.0
    %164 = vmatprep.subr.mxu0 0.0
    %165 = vmatpush1.msra.mxu0 0.0
    %166 = vmatprep.subr.mxu0 0.0
    %167 = vmatpush1.msra.mxu0 0.0
    %168 = vmatprep.subr.mxu0 0.0
    %169 = vmatpush1.msra.mxu0 0.0
    %170 = vmatprep.subr.mxu0 0.0
    %171 = vmatpush1.msra.mxu0 0.0
    %172 = vmatprep.subr.mxu0 0.0
    %173 = vmatpush1.msra.mxu0 0.0
    %174 = vmatprep.subr.mxu0 0.0
    %175 = vmatpush1.msra.mxu0 0.0
    %176 = vmatprep.subr.mxu0 0.0
    %177 = vmatpush1.msra.mxu0 0.0
    %178 = vmatprep.subr.mxu0 0.0
    %179 = vmatpush1.msra.mxu0 0.0
    %180 = vmatprep.subr.mxu0 0.0
    %181 = vmatpush1.msra.mxu0 0.0
    %182 = vmatprep.subr.mxu0 0.0
    %183 = vmatpush1.msra.mxu0 0.0
    %184 = vmatprep.subr.mxu0 0.0
    %185 = vmatpush1.msra.mxu0 0.0
    %186 = vmatprep.subr.mxu0 0.0
    %187 = vmatpush1.msra.mxu0 0.0
    %188 = vmatprep.subr.mxu0 0.0
    %189 = vmatpush1.msra.mxu0 0.0
    %190 = vmatprep.subr.mxu0 0.0
    %191 = vmatpush1.msra.mxu0 0.0
    %192 = vmatprep.subr.mxu0 0.0
    %193 = vmatpush1.msra.mxu0 0.0
    %194 = vmatprep.subr.mxu0 0.0
    %195 = vmatpush1.msra.mxu0 0.0
    %196 = vmatprep.mubr.f32.mxu0 0.0
    %v197 = vand.u32 %v49, 4294901760
    %198 = vmatmul.mubr.f32.gmra.mrb[0].mxu0 %v197
    %v199 = vpop.f32.mrb[0].mxu0
    %v200 = vadd.f32 %v124, %v199
    %v201 = vpop.f32.mrb[0].mxu0
    %202 = vdwg.mxu0
    %203 = vmatprep.subr.mxu0 0.0
    %v204 = vand.u32 %v39, 4294901760
    %v205 = vsub.f32 %v39, %v204
    %206 = vmatpush1.msra.mxu0 %v205
    %207 = vmatprep.subr.mxu0 0.0
    %208 = vmatpush1.msra.mxu0 0.0
    %209 = vmatprep.subr.mxu0 0.0
    %210 = vmatpush1.msra.mxu0 0.0
    %211 = vmatprep.subr.mxu0 0.0
    %212 = vmatpush1.msra.mxu0 0.0
    %213 = vmatprep.subr.mxu0 0.0
    %214 = vmatpush1.msra.mxu0 0.0
    %215 = vmatprep.subr.mxu0 0.0
    %216 = vmatpush1.msra.mxu0 0.0
    %217 = vmatprep.subr.mxu0 0.0
    %218 = vmatpush1.msra.mxu0 0.0
    %219 = vmatprep.subr.mxu0 0.0
    %220 = vmatpush1.msra.mxu0 0.0
    %221 = vmatprep.subr.mxu0 0.0
    %222 = vmatpush1.msra.mxu0 0.0
    %223 = vmatprep.subr.mxu0 0.0
    %224 = vmatpush1.msra.mxu0 0.0
    %225 = vmatprep.subr.mxu0 0.0
    %226 = vmatpush1.msra.mxu0 0.0
    %227 = vmatprep.subr.mxu0 0.0
    %228 = vmatpush1.msra.mxu0 0.0
    %229 = vmatprep.subr.mxu0 0.0
    %230 = vmatpush1.msra.mxu0 0.0
    %231 = vmatprep.subr.mxu0 0.0
    %232 = vmatpush1.msra.mxu0 0.0
    %233 = vmatprep.subr.mxu0 0.0
    %234 = vmatpush1.msra.mxu0 0.0
    %235 = vmatprep.subr.mxu0 0.0
    %236 = vmatpush1.msra.mxu0 0.0
    %237 = vmatprep.subr.mxu0 0.0
    %238 = vmatpush1.msra.mxu0 0.0
    %239 = vmatprep.subr.mxu0 0.0
    %240 = vmatpush1.msra.mxu0 0.0
    %241 = vmatprep.subr.mxu0 0.0
    %242 = vmatpush1.msra.mxu0 0.0
    %243 = vmatprep.subr.mxu0 0.0
    %244 = vmatpush1.msra.mxu0 0.0
    %245 = vmatprep.subr.mxu0 0.0
    %246 = vmatpush1.msra.mxu0 0.0
    %247 = vmatprep.subr.mxu0 0.0
    %248 = vmatpush1.msra.mxu0 0.0
    %249 = vmatprep.subr.mxu0 0.0
    %250 = vmatpush1.msra.mxu0 0.0
    %251 = vmatprep.subr.mxu0 0.0
    %252 = vmatpush1.msra.mxu0 0.0
    %253 = vmatprep.subr.mxu0 0.0
    %254 = vmatpush1.msra.mxu0 0.0
    %255 = vmatprep.subr.mxu0 0.0
    %256 = vmatpush1.msra.mxu0 0.0
    %257 = vmatprep.subr.mxu0 0.0
    %258 = vmatpush1.msra.mxu0 0.0
    %259 = vmatprep.subr.mxu0 0.0
    %260 = vmatpush1.msra.mxu0 0.0
    %261 = vmatprep.subr.mxu0 0.0
    %262 = vmatpush1.msra.mxu0 0.0
    %263 = vmatprep.subr.mxu0 0.0
    %264 = vmatpush1.msra.mxu0 0.0
    %265 = vmatprep.subr.mxu0 0.0
    %266 = vmatpush1.msra.mxu0 0.0
    %267 = vmatprep.subr.mxu0 0.0
    %268 = vmatpush1.msra.mxu0 0.0
    %269 = vmatprep.mubr.f32.mxu0 0.0
    %v270 = vand.u32 %v49, 4294901760
    %v271 = vsub.f32 %v49, %v270
    %272 = vmatmul.mubr.f32.gmra.mrb[0].mxu0 %v271
    %v273 = vpop.f32.mrb[0].mxu0
    %v274 = vadd.f32 %v200, %v273
    %v275 = vpop.f32.mrb[0].mxu0
    %276 = vdwg.mxu0
    %277 = vmatprep.subr.mxu0 0.0
    %v278 = vand.u32 %v39, 4294901760
    %279 = vmatpush1.msra.mxu0 %v278
    %280 = vmatprep.subr.mxu0 0.0
    %281 = vmatpush1.msra.mxu0 0.0
    %282 = vmatprep.subr.mxu0 0.0
    %283 = vmatpush1.msra.mxu0 0.0
    %284 = vmatprep.subr.mxu0 0.0
    %285 = vmatpush1.msra.mxu0 0.0
    %286 = vmatprep.subr.mxu0 0.0
    %287 = vmatpush1.msra.mxu0 0.0
    %288 = vmatprep.subr.mxu0 0.0
    %289 = vmatpush1.msra.mxu0 0.0
    %290 = vmatprep.subr.mxu0 0.0
    %291 = vmatpush1.msra.mxu0 0.0
    %292 = vmatprep.subr.mxu0 0.0
    %293 = vmatpush1.msra.mxu0 0.0
    %294 = vmatprep.subr.mxu0 0.0
    %295 = vmatpush1.msra.mxu0 0.0
    %296 = vmatprep.subr.mxu0 0.0
    %297 = vmatpush1.msra.mxu0 0.0
    %298 = vmatprep.subr.mxu0 0.0
    %299 = vmatpush1.msra.mxu0 0.0
    %300 = vmatprep.subr.mxu0 0.0
    %301 = vmatpush1.msra.mxu0 0.0
    %302 = vmatprep.subr.mxu0 0.0
    %303 = vmatpush1.msra.mxu0 0.0
    %304 = vmatprep.subr.mxu0 0.0
    %305 = vmatpush1.msra.mxu0 0.0
    %306 = vmatprep.subr.mxu0 0.0
    %307 = vmatpush1.msra.mxu0 0.0
    %308 = vmatprep.subr.mxu0 0.0
    %309 = vmatpush1.msra.mxu0 0.0
    %310 = vmatprep.subr.mxu0 0.0
    %311 = vmatpush1.msra.mxu0 0.0
    %312 = vmatprep.subr.mxu0 0.0
    %313 = vmatpush1.msra.mxu0 0.0
    %314 = vmatprep.subr.mxu0 0.0
    %315 = vmatpush1.msra.mxu0 0.0
    %316 = vmatprep.subr.mxu0 0.0
    %317 = vmatpush1.msra.mxu0 0.0
    %318 = vmatprep.subr.mxu0 0.0
    %319 = vmatpush1.msra.mxu0 0.0
    %320 = vmatprep.subr.mxu0 0.0
    %321 = vmatpush1.msra.mxu0 0.0
    %322 = vmatprep.subr.mxu0 0.0
    %323 = vmatpush1.msra.mxu0 0.0
    %324 = vmatprep.subr.mxu0 0.0
    %325 = vmatpush1.msra.mxu0 0.0
    %326 = vmatprep.subr.mxu0 0.0
    %327 = vmatpush1.msra.mxu0 0.0
    %328 = vmatprep.subr.mxu0 0.0
    %329 = vmatpush1.msra.mxu0 0.0
    %330 = vmatprep.subr.mxu0 0.0
    %331 = vmatpush1.msra.mxu0 0.0
    %332 = vmatprep.subr.mxu0 0.0
    %333 = vmatpush1.msra.mxu0 0.0
    %334 = vmatprep.subr.mxu0 0.0
    %335 = vmatpush1.msra.mxu0 0.0
    %336 = vmatprep.subr.mxu0 0.0
    %337 = vmatpush1.msra.mxu0 0.0
    %338 = vmatprep.subr.mxu0 0.0
    %339 = vmatpush1.msra.mxu0 0.0
    %340 = vmatprep.subr.mxu0 0.0
    %341 = vmatpush1.msra.mxu0 0.0
    %342 = vmatprep.mubr.f32.mxu0 0.0
    %v343 = vand.u32 %v49, 4294901760
    %v344 = vsub.f32 %v49, %v343
    %v345 = vand.u32 %v344, 4294901760
    %346 = vmatmul.mubr.f32.gmra.mrb[0].mxu0 %v345
    %v347 = vpop.f32.mrb[0].mxu0
    %v348 = vadd.f32 %v274, %v347
    %v349 = vpop.f32.mrb[0].mxu0
    %350 = vdwg.mxu0
    %351 = vmatprep.subr.mxu0 0.0
    %v352 = vand.u32 %v39, 4294901760
    %v353 = vsub.f32 %v39, %v352
    %v354 = vand.u32 %v353, 4294901760
    %355 = vmatpush1.msra.mxu0 %v354
    %356 = vmatprep.subr.mxu0 0.0
    %357 = vmatpush1.msra.mxu0 0.0
    %358 = vmatprep.subr.mxu0 0.0
    %359 = vmatpush1.msra.mxu0 0.0
    %360 = vmatprep.subr.mxu0 0.0
    %361 = vmatpush1.msra.mxu0 0.0
    %362 = vmatprep.subr.mxu0 0.0
    %363 = vmatpush1.msra.mxu0 0.0
    %364 = vmatprep.subr.mxu0 0.0
    %365 = vmatpush1.msra.mxu0 0.0
    %366 = vmatprep.subr.mxu0 0.0
    %367 = vmatpush1.msra.mxu0 0.0
    %368 = vmatprep.subr.mxu0 0.0
    %369 = vmatpush1.msra.mxu0 0.0
    %370 = vmatprep.subr.mxu0 0.0
    %371 = vmatpush1.msra.mxu0 0.0
    %372 = vmatprep.subr.mxu0 0.0
    %373 = vmatpush1.msra.mxu0 0.0
    %374 = vmatprep.subr.mxu0 0.0
    %375 = vmatpush1.msra.mxu0 0.0
    %376 = vmatprep.subr.mxu0 0.0
    %377 = vmatpush1.msra.mxu0 0.0
    %378 = vmatprep.subr.mxu0 0.0
    %379 = vmatpush1.msra.mxu0 0.0
    %380 = vmatprep.subr.mxu0 0.0
    %381 = vmatpush1.msra.mxu0 0.0
    %382 = vmatprep.subr.mxu0 0.0
    %383 = vmatpush1.msra.mxu0 0.0
    %384 = vmatprep.subr.mxu0 0.0
    %385 = vmatpush1.msra.mxu0 0.0
    %386 = vmatprep.subr.mxu0 0.0
    %387 = vmatpush1.msra.mxu0 0.0
    %388 = vmatprep.subr.mxu0 0.0
    %389 = vmatpush1.msra.mxu0 0.0
    %390 = vmatprep.subr.mxu0 0.0
    %391 = vmatpush1.msra.mxu0 0.0
    %392 = vmatprep.subr.mxu0 0.0
    %393 = vmatpush1.msra.mxu0 0.0
    %394 = vmatprep.subr.mxu0 0.0
    %395 = vmatpush1.msra.mxu0 0.0
    %396 = vmatprep.subr.mxu0 0.0
    %397 = vmatpush1.msra.mxu0 0.0
    %398 = vmatprep.subr.mxu0 0.0
    %399 = vmatpush1.msra.mxu0 0.0
    %400 = vmatprep.subr.mxu0 0.0
    %401 = vmatpush1.msra.mxu0 0.0
    %402 = vmatprep.subr.mxu0 0.0
    %403 = vmatpush1.msra.mxu0 0.0
    %404 = vmatprep.subr.mxu0 0.0
    %405 = vmatpush1.msra.mxu0 0.0
    %406 = vmatprep.subr.mxu0 0.0
    %407 = vmatpush1.msra.mxu0 0.0
    %408 = vmatprep.subr.mxu0 0.0
    %409 = vmatpush1.msra.mxu0 0.0
    %410 = vmatprep.subr.mxu0 0.0
    %411 = vmatpush1.msra.mxu0 0.0
    %412 = vmatprep.subr.mxu0 0.0
    %413 = vmatpush1.msra.mxu0 0.0
    %414 = vmatprep.subr.mxu0 0.0
    %415 = vmatpush1.msra.mxu0 0.0
    %416 = vmatprep.subr.mxu0 0.0
    %417 = vmatpush1.msra.mxu0 0.0
    %418 = vmatprep.mubr.f32.mxu0 0.0
    %v419 = vand.u32 %v49, 4294901760
    %420 = vmatmul.mubr.f32.gmra.mrb[0].mxu0 %v419
    %v421 = vpop.f32.mrb[0].mxu0
    %v422 = vadd.f32 %v348, %v421
    %v423 = vpop.f32.mrb[0].mxu0
    %424 = vdwg.mxu0
    %425 = vmatprep.subr.mxu0 0.0
    %v426 = vand.u32 %v39, 4294901760
    %427 = vmatpush1.msra.mxu0 %v426
    %428 = vmatprep.subr.mxu0 0.0
    %429 = vmatpush1.msra.mxu0 0.0
    %430 = vmatprep.subr.mxu0 0.0
    %431 = vmatpush1.msra.mxu0 0.0
    %432 = vmatprep.subr.mxu0 0.0
    %433 = vmatpush1.msra.mxu0 0.0
    %434 = vmatprep.subr.mxu0 0.0
    %435 = vmatpush1.msra.mxu0 0.0
    %436 = vmatprep.subr.mxu0 0.0
    %437 = vmatpush1.msra.mxu0 0.0
    %438 = vmatprep.subr.mxu0 0.0
    %439 = vmatpush1.msra.mxu0 0.0
    %440 = vmatprep.subr.mxu0 0.0
    %441 = vmatpush1.msra.mxu0 0.0
    %442 = vmatprep.subr.mxu0 0.0
    %443 = vmatpush1.msra.mxu0 0.0
    %444 = vmatprep.subr.mxu0 0.0
    %445 = vmatpush1.msra.mxu0 0.0
    %446 = vmatprep.subr.mxu0 0.0
    %447 = vmatpush1.msra.mxu0 0.0
    %448 = vmatprep.subr.mxu0 0.0
    %449 = vmatpush1.msra.mxu0 0.0
    %450 = vmatprep.subr.mxu0 0.0
    %451 = vmatpush1.msra.mxu0 0.0
    %452 = vmatprep.subr.mxu0 0.0
    %453 = vmatpush1.msra.mxu0 0.0
    %454 = vmatprep.subr.mxu0 0.0
    %455 = vmatpush1.msra.mxu0 0.0
    %456 = vmatprep.subr.mxu0 0.0
    %457 = vmatpush1.msra.mxu0 0.0
    %458 = vmatprep.subr.mxu0 0.0
    %459 = vmatpush1.msra.mxu0 0.0
    %460 = vmatprep.subr.mxu0 0.0
    %461 = vmatpush1.msra.mxu0 0.0
    %462 = vmatprep.subr.mxu0 0.0
    %463 = vmatpush1.msra.mxu0 0.0
    %464 = vmatprep.subr.mxu0 0.0
    %465 = vmatpush1.msra.mxu0 0.0
    %466 = vmatprep.subr.mxu0 0.0
    %467 = vmatpush1.msra.mxu0 0.0
    %468 = vmatprep.subr.mxu0 0.0
    %469 = vmatpush1.msra.mxu0 0.0
    %470 = vmatprep.subr.mxu0 0.0
    %471 = vmatpush1.msra.mxu0 0.0
    %472 = vmatprep.subr.mxu0 0.0
    %473 = vmatpush1.msra.mxu0 0.0
    %474 = vmatprep.subr.mxu0 0.0
    %475 = vmatpush1.msra.mxu0 0.0
    %476 = vmatprep.subr.mxu0 0.0
    %477 = vmatpush1.msra.mxu0 0.0
    %478 = vmatprep.subr.mxu0 0.0
    %479 = vmatpush1.msra.mxu0 0.0
    %480 = vmatprep.subr.mxu0 0.0
    %481 = vmatpush1.msra.mxu0 0.0
    %482 = vmatprep.subr.mxu0 0.0
    %483 = vmatpush1.msra.mxu0 0.0
    %484 = vmatprep.subr.mxu0 0.0
    %485 = vmatpush1.msra.mxu0 0.0
    %486 = vmatprep.subr.mxu0 0.0
    %487 = vmatpush1.msra.mxu0 0.0
    %488 = vmatprep.subr.mxu0 0.0
    %489 = vmatpush1.msra.mxu0 0.0
    %490 = vmatprep.mubr.f32.mxu0 0.0
    %v491 = vand.u32 %v49, 4294901760
    %492 = vmatmul.mubr.f32.gmra.mrb[0].mxu0 %v491
    %v493 = vpop.f32.mrb[0].mxu0
    %v494 = vadd.f32 %v422, %v493
    %v495 = vpop.f32.mrb[0].mxu0
    %496 = vdwg.mxu0
    %vm497 = vcmp.gt.f32.partialorder %v494, 0.0
    %v498 = vmul.f32 %v494, 0.01
    %v499 = vsel %vm497, %v494, %v498
    %v500 = vld [vmem:[%s3] sm:$0xff]
    %v501 = vld [vmem:[%s3 + $0x8] sm:$0xff]
    %v502 = vld [vmem:[%s3 + $0x10] sm:$0xff]
    %v503 = vld [vmem:[%s3 + $0x18] sm:$0xff]
    %v504 = vld [vmem:[%s3 + $0x20] sm:$0xff]
    %v505 = vld [vmem:[%s3 + $0x28] sm:$0xff]
    %v506 = vld [vmem:[%s3 + $0x30] sm:$0xff]
    %v507 = vld [vmem:[%s3 + $0x38] sm:$0xff]
    %v508 = vld [vmem:[%s3 + $0x40] sm:$0xff]
    %v509 = vld [vmem:[%s3 + $0x48] sm:$0xff]
    %v510 = vld [vmem:[%s3 + $0x50] sm:$0xff]
    %v511 = vld [vmem:[%s3 + $0x58] sm:$0xff]
    %v512 = vld [vmem:[%s3 + $0x60] sm:$0xff]
    %v513 = vld [vmem:[%s3 + $0x68] sm:$0xff]
    %v514 = vld [vmem:[%s3 + $0x70] sm:$0xff]
    %v515 = vld [vmem:[%s3 + $0x78] sm:$0xff]
    %v516 = vld [vmem:[%s4] sm:$0x1]
    %v518 = vlaneseq
    %v519 = vshrl.u32 %v518, 7
    %v520 = vsub.s32 0, %v519
    %v521 = vrot.slane %v516, %v520
    %523 = vmatprep.subr.mxu0 0.0
    %v524 = vand.u32 %v500, 4294901760
    %525 = vmatpush1.msra.mxu0 %v524
    %526 = vmatprep.subr.mxu0 0.0
    %v527 = vand.u32 %v501, 4294901760
    %528 = vmatpush1.msra.mxu0 %v527
    %529 = vmatprep.subr.mxu0 0.0
    %v530 = vand.u32 %v502, 4294901760
    %531 = vmatpush1.msra.mxu0 %v530
    %532 = vmatprep.subr.mxu0 0.0
    %v533 = vand.u32 %v503, 4294901760
    %534 = vmatpush1.msra.mxu0 %v533
    %535 = vmatprep.subr.mxu0 0.0
    %v536 = vand.u32 %v504, 4294901760
    %537 = vmatpush1.msra.mxu0 %v536
    %538 = vmatprep.subr.mxu0 0.0
    %v539 = vand.u32 %v505, 4294901760
    %540 = vmatpush1.msra.mxu0 %v539
    %541 = vmatprep.subr.mxu0 0.0
    %v542 = vand.u32 %v506, 4294901760
    %543 = vmatpush1.msra.mxu0 %v542
    %544 = vmatprep.subr.mxu0 0.0
    %v545 = vand.u32 %v507, 4294901760
    %546 = vmatpush1.msra.mxu0 %v545
    %547 = vmatprep.subr.mxu0 0.0
    %v548 = vand.u32 %v508, 4294901760
    %549 = vmatpush1.msra.mxu0 %v548
    %550 = vmatprep.subr.mxu0 0.0
    %v551 = vand.u32 %v509, 4294901760
    %552 = vmatpush1.msra.mxu0 %v551
    %553 = vmatprep.subr.mxu0 0.0
    %v554 = vand.u32 %v510, 4294901760
    %555 = vmatpush1.msra.mxu0 %v554
    %556 = vmatprep.subr.mxu0 0.0
    %v557 = vand.u32 %v511, 4294901760
    %558 = vmatpush1.msra.mxu0 %v557
    %559 = vmatprep.subr.mxu0 0.0
    %v560 = vand.u32 %v512, 4294901760
    %561 = vmatpush1.msra.mxu0 %v560
    %562 = vmatprep.subr.mxu0 0.0
    %v563 = vand.u32 %v513, 4294901760
    %564 = vmatpush1.msra.mxu0 %v563
    %565 = vmatprep.subr.mxu0 0.0
    %v566 = vand.u32 %v514, 4294901760
    %567 = vmatpush1.msra.mxu0 %v566
    %568 = vmatprep.subr.mxu0 0.0
    %v569 = vand.u32 %v515, 4294901760
    %570 = vmatpush1.msra.mxu0 %v569
    %571 = vmatprep.subr.mxu0 0.0
    %572 = vmatpush1.msra.mxu0 0.0
    %573 = vmatprep.subr.mxu0 0.0
    %574 = vmatpush1.msra.mxu0 0.0
    %575 = vmatprep.subr.mxu0 0.0
    %576 = vmatpush1.msra.mxu0 0.0
    %577 = vmatprep.subr.mxu0 0.0
    %578 = vmatpush1.msra.mxu0 0.0
    %579 = vmatprep.subr.mxu0 0.0
    %580 = vmatpush1.msra.mxu0 0.0
    %581 = vmatprep.subr.mxu0 0.0
    %582 = vmatpush1.msra.mxu0 0.0
    %583 = vmatprep.subr.mxu0 0.0
    %584 = vmatpush1.msra.mxu0 0.0
    %585 = vmatprep.subr.mxu0 0.0
    %586 = vmatpush1.msra.mxu0 0.0
    %587 = vmatprep.subr.mxu0 0.0
    %588 = vmatpush1.msra.mxu0 0.0
    %589 = vmatprep.subr.mxu0 0.0
    %590 = vmatpush1.msra.mxu0 0.0
    %591 = vmatprep.subr.mxu0 0.0
    %592 = vmatpush1.msra.mxu0 0.0
    %593 = vmatprep.subr.mxu0 0.0
    %594 = vmatpush1.msra.mxu0 0.0
    %595 = vmatprep.subr.mxu0 0.0
    %596 = vmatpush1.msra.mxu0 0.0
    %597 = vmatprep.subr.mxu0 0.0
    %598 = vmatpush1.msra.mxu0 0.0
    %599 = vmatprep.subr.mxu0 0.0
    %600 = vmatpush1.msra.mxu0 0.0
    %601 = vmatprep.subr.mxu0 0.0
    %602 = vmatpush1.msra.mxu0 0.0
    %603 = vmatprep.mubr.f32.mxu0 0.0
    %v604 = vand.u32 %v499, 4294901760
    %v605 = vsub.f32 %v499, %v604
    %v606 = vand.u32 %v605, 4294901760
    %v607 = vsub.f32 %v605, %v606
    %v608 = vand.u32 %v607, 4294901760
    %609 = vmatmul.mubr.f32.gmra.mrb[0].mxu0 %v608
    %v610 = vpop.f32.mrb[0].mxu0
    %v611 = vadd.f32 %v521, %v610
    %v612 = vpop.f32.mrb[0].mxu0
    %613 = vdwg.mxu0
    %614 = vmatprep.subr.mxu0 0.0
    %v615 = vand.u32 %v500, 4294901760
    %v616 = vsub.f32 %v500, %v615
    %v617 = vand.u32 %v616, 4294901760
    %v618 = vsub.f32 %v616, %v617
    %v619 = vand.u32 %v618, 4294901760
    %620 = vmatpush1.msra.mxu0 %v619
    %621 = vmatprep.subr.mxu0 0.0
    %v622 = vand.u32 %v501, 4294901760
    %v623 = vsub.f32 %v501, %v622
    %v624 = vand.u32 %v623, 4294901760
    %v625 = vsub.f32 %v623, %v624
    %v626 = vand.u32 %v625, 4294901760
    %627 = vmatpush1.msra.mxu0 %v626
    %628 = vmatprep.subr.mxu0 0.0
    %v629 = vand.u32 %v502, 4294901760
    %v630 = vsub.f32 %v502, %v629
    %v631 = vand.u32 %v630, 4294901760
    %v632 = vsub.f32 %v630, %v631
    %v633 = vand.u32 %v632, 4294901760
    %634 = vmatpush1.msra.mxu0 %v633
    %635 = vmatprep.subr.mxu0 0.0
    %v636 = vand.u32 %v503, 4294901760
    %v637 = vsub.f32 %v503, %v636
    %v638 = vand.u32 %v637, 4294901760
    %v639 = vsub.f32 %v637, %v638
    %v640 = vand.u32 %v639, 4294901760
    %641 = vmatpush1.msra.mxu0 %v640
    %642 = vmatprep.subr.mxu0 0.0
    %v643 = vand.u32 %v504, 4294901760
    %v644 = vsub.f32 %v504, %v643
    %v645 = vand.u32 %v644, 4294901760
    %v646 = vsub.f32 %v644, %v645
    %v647 = vand.u32 %v646, 4294901760
    %648 = vmatpush1.msra.mxu0 %v647
    %649 = vmatprep.subr.mxu0 0.0
    %v650 = vand.u32 %v505, 4294901760
    %v651 = vsub.f32 %v505, %v650
    %v652 = vand.u32 %v651, 4294901760
    %v653 = vsub.f32 %v651, %v652
    %v654 = vand.u32 %v653, 4294901760
    %655 = vmatpush1.msra.mxu0 %v654
    %656 = vmatprep.subr.mxu0 0.0
    %v657 = vand.u32 %v506, 4294901760
    %v658 = vsub.f32 %v506, %v657
    %v659 = vand.u32 %v658, 4294901760
    %v660 = vsub.f32 %v658, %v659
    %v661 = vand.u32 %v660, 4294901760
    %662 = vmatpush1.msra.mxu0 %v661
    %663 = vmatprep.subr.mxu0 0.0
    %v664 = vand.u32 %v507, 4294901760
    %v665 = vsub.f32 %v507, %v664
    %v666 = vand.u32 %v665, 4294901760
    %v667 = vsub.f32 %v665, %v666
    %v668 = vand.u32 %v667, 4294901760
    %669 = vmatpush1.msra.mxu0 %v668
    %670 = vmatprep.subr.mxu0 0.0
    %v671 = vand.u32 %v508, 4294901760
    %v672 = vsub.f32 %v508, %v671
    %v673 = vand.u32 %v672, 4294901760
    %v674 = vsub.f32 %v672, %v673
    %v675 = vand.u32 %v674, 4294901760
    %676 = vmatpush1.msra.mxu0 %v675
    %677 = vmatprep.subr.mxu0 0.0
    %v678 = vand.u32 %v509, 4294901760
    %v679 = vsub.f32 %v509, %v678
    %v680 = vand.u32 %v679, 4294901760
    %v681 = vsub.f32 %v679, %v680
    %v682 = vand.u32 %v681, 4294901760
    %683 = vmatpush1.msra.mxu0 %v682
    %684 = vmatprep.subr.mxu0 0.0
    %v685 = vand.u32 %v510, 4294901760
    %v686 = vsub.f32 %v510, %v685
    %v687 = vand.u32 %v686, 4294901760
    %v688 = vsub.f32 %v686, %v687
    %v689 = vand.u32 %v688, 4294901760
    %690 = vmatpush1.msra.mxu0 %v689
    %691 = vmatprep.subr.mxu0 0.0
    %v692 = vand.u32 %v511, 4294901760
    %v693 = vsub.f32 %v511, %v692
    %v694 = vand.u32 %v693, 4294901760
    %v695 = vsub.f32 %v693, %v694
    %v696 = vand.u32 %v695, 4294901760
    %697 = vmatpush1.msra.mxu0 %v696
    %698 = vmatprep.subr.mxu0 0.0
    %v699 = vand.u32 %v512, 4294901760
    %v700 = vsub.f32 %v512, %v699
    %v701 = vand.u32 %v700, 4294901760
    %v702 = vsub.f32 %v700, %v701
    %v703 = vand.u32 %v702, 4294901760
    %704 = vmatpush1.msra.mxu0 %v703
    %705 = vmatprep.subr.mxu0 0.0
    %v706 = vand.u32 %v513, 4294901760
    %v707 = vsub.f32 %v513, %v706
    %v708 = vand.u32 %v707, 4294901760
    %v709 = vsub.f32 %v707, %v708
    %v710 = vand.u32 %v709, 4294901760
    %711 = vmatpush1.msra.mxu0 %v710
    %712 = vmatprep.subr.mxu0 0.0
    %v713 = vand.u32 %v514, 4294901760
    %v714 = vsub.f32 %v514, %v713
    %v715 = vand.u32 %v714, 4294901760
    %v716 = vsub.f32 %v714, %v715
    %v717 = vand.u32 %v716, 4294901760
    %718 = vmatpush1.msra.mxu0 %v717
    %719 = vmatprep.subr.mxu0 0.0
    %v720 = vand.u32 %v515, 4294901760
    %v721 = vsub.f32 %v515, %v720
    %v722 = vand.u32 %v721, 4294901760
    %v723 = vsub.f32 %v721, %v722
    %v724 = vand.u32 %v723, 4294901760
    %725 = vmatpush1.msra.mxu0 %v724
    %726 = vmatprep.subr.mxu0 0.0
    %727 = vmatpush1.msra.mxu0 0.0
    %728 = vmatprep.subr.mxu0 0.0
    %729 = vmatpush1.msra.mxu0 0.0
    %730 = vmatprep.subr.mxu0 0.0
    %731 = vmatpush1.msra.mxu0 0.0
    %732 = vmatprep.subr.mxu0 0.0
    %733 = vmatpush1.msra.mxu0 0.0
    %734 = vmatprep.subr.mxu0 0.0
    %735 = vmatpush1.msra.mxu0 0.0
    %736 = vmatprep.subr.mxu0 0.0
    %737 = vmatpush1.msra.mxu0 0.0
    %738 = vmatprep.subr.mxu0 0.0
    %739 = vmatpush1.msra.mxu0 0.0
    %740 = vmatprep.subr.mxu0 0.0
    %741 = vmatpush1.msra.mxu0 0.0
    %742 = vmatprep.subr.mxu0 0.0
    %743 = vmatpush1.msra.mxu0 0.0
    %744 = vmatprep.subr.mxu0 0.0
    %745 = vmatpush1.msra.mxu0 0.0
    %746 = vmatprep.subr.mxu0 0.0
    %747 = vmatpush1.msra.mxu0 0.0
    %748 = vmatprep.subr.mxu0 0.0
    %749 = vmatpush1.msra.mxu0 0.0
    %750 = vmatprep.subr.mxu0 0.0
    %751 = vmatpush1.msra.mxu0 0.0
    %752 = vmatprep.subr.mxu0 0.0
    %753 = vmatpush1.msra.mxu0 0.0
    %754 = vmatprep.subr.mxu0 0.0
    %755 = vmatpush1.msra.mxu0 0.0
    %756 = vmatprep.subr.mxu0 0.0
    %757 = vmatpush1.msra.mxu0 0.0
    %758 = vmatprep.mubr.f32.mxu0 0.0
    %v759 = vand.u32 %v499, 4294901760
    %760 = vmatmul.mubr.f32.gmra.mrb[0].mxu0 %v759
    %v761 = vpop.f32.mrb[0].mxu0
    %v762 = vadd.f32 %v611, %v761
    %v763 = vpop.f32.mrb[0].mxu0
    %764 = vdwg.mxu0
    %765 = vmatprep.subr.mxu0 0.0
    %v766 = vand.u32 %v500, 4294901760
    %v767 = vsub.f32 %v500, %v766
    %768 = vmatpush1.msra.mxu0 %v767
    %769 = vmatprep.subr.mxu0 0.0
    %v770 = vand.u32 %v501, 4294901760
    %v771 = vsub.f32 %v501, %v770
    %772 = vmatpush1.msra.mxu0 %v771
    %773 = vmatprep.subr.mxu0 0.0
    %v774 = vand.u32 %v502, 4294901760
    %v775 = vsub.f32 %v502, %v774
    %776 = vmatpush1.msra.mxu0 %v775
    %777 = vmatprep.subr.mxu0 0.0
    %v778 = vand.u32 %v503, 4294901760
    %v779 = vsub.f32 %v503, %v778
    %780 = vmatpush1.msra.mxu0 %v779
    %781 = vmatprep.subr.mxu0 0.0
    %v782 = vand.u32 %v504, 4294901760
    %v783 = vsub.f32 %v504, %v782
    %784 = vmatpush1.msra.mxu0 %v783
    %785 = vmatprep.subr.mxu0 0.0
    %v786 = vand.u32 %v505, 4294901760
    %v787 = vsub.f32 %v505, %v786
    %788 = vmatpush1.msra.mxu0 %v787
    %789 = vmatprep.subr.mxu0 0.0
    %v790 = vand.u32 %v506, 4294901760
    %v791 = vsub.f32 %v506, %v790
    %792 = vmatpush1.msra.mxu0 %v791
    %793 = vmatprep.subr.mxu0 0.0
    %v794 = vand.u32 %v507, 4294901760
    %v795 = vsub.f32 %v507, %v794
    %796 = vmatpush1.msra.mxu0 %v795
    %797 = vmatprep.subr.mxu0 0.0
    %v798 = vand.u32 %v508, 4294901760
    %v799 = vsub.f32 %v508, %v798
    %800 = vmatpush1.msra.mxu0 %v799
    %801 = vmatprep.subr.mxu0 0.0
    %v802 = vand.u32 %v509, 4294901760
    %v803 = vsub.f32 %v509, %v802
    %804 = vmatpush1.msra.mxu0 %v803
    %805 = vmatprep.subr.mxu0 0.0
    %v806 = vand.u32 %v510, 4294901760
    %v807 = vsub.f32 %v510, %v806
    %808 = vmatpush1.msra.mxu0 %v807
    %809 = vmatprep.subr.mxu0 0.0
    %v810 = vand.u32 %v511, 4294901760
    %v811 = vsub.f32 %v511, %v810
    %812 = vmatpush1.msra.mxu0 %v811
    %813 = vmatprep.subr.mxu0 0.0
    %v814 = vand.u32 %v512, 4294901760
    %v815 = vsub.f32 %v512, %v814
    %816 = vmatpush1.msra.mxu0 %v815
    %817 = vmatprep.subr.mxu0 0.0
    %v818 = vand.u32 %v513, 4294901760
    %v819 = vsub.f32 %v513, %v818
    %820 = vmatpush1.msra.mxu0 %v819
    %821 = vmatprep.subr.mxu0 0.0
    %v822 = vand.u32 %v514, 4294901760
    %v823 = vsub.f32 %v514, %v822
    %824 = vmatpush1.msra.mxu0 %v823
    %825 = vmatprep.subr.mxu0 0.0
    %v826 = vand.u32 %v515, 4294901760
    %v827 = vsub.f32 %v515, %v826
    %828 = vmatpush1.msra.mxu0 %v827
    %829 = vmatprep.subr.mxu0 0.0
    %830 = vmatpush1.msra.mxu0 0.0
    %831 = vmatprep.subr.mxu0 0.0
    %832 = vmatpush1.msra.mxu0 0.0
    %833 = vmatprep.subr.mxu0 0.0
    %834 = vmatpush1.msra.mxu0 0.0
    %835 = vmatprep.subr.mxu0 0.0
    %836 = vmatpush1.msra.mxu0 0.0
    %837 = vmatprep.subr.mxu0 0.0
    %838 = vmatpush1.msra.mxu0 0.0
    %839 = vmatprep.subr.mxu0 0.0
    %840 = vmatpush1.msra.mxu0 0.0
    %841 = vmatprep.subr.mxu0 0.0
    %842 = vmatpush1.msra.mxu0 0.0
    %843 = vmatprep.subr.mxu0 0.0
    %844 = vmatpush1.msra.mxu0 0.0
    %845 = vmatprep.subr.mxu0 0.0
    %846 = vmatpush1.msra.mxu0 0.0
    %847 = vmatprep.subr.mxu0 0.0
    %848 = vmatpush1.msra.mxu0 0.0
    %849 = vmatprep.subr.mxu0 0.0
    %850 = vmatpush1.msra.mxu0 0.0
    %851 = vmatprep.subr.mxu0 0.0
    %852 = vmatpush1.msra.mxu0 0.0
    %853 = vmatprep.subr.mxu0 0.0
    %854 = vmatpush1.msra.mxu0 0.0
    %855 = vmatprep.subr.mxu0 0.0
    %856 = vmatpush1.msra.mxu0 0.0
    %857 = vmatprep.subr.mxu0 0.0
    %858 = vmatpush1.msra.mxu0 0.0
    %859 = vmatprep.subr.mxu0 0.0
    %860 = vmatpush1.msra.mxu0 0.0
    %861 = vmatprep.mubr.f32.mxu0 0.0
    %v862 = vand.u32 %v499, 4294901760
    %v863 = vsub.f32 %v499, %v862
    %864 = vmatmul.mubr.f32.gmra.mrb[0].mxu0 %v863
    %v865 = vpop.f32.mrb[0].mxu0
    %v866 = vadd.f32 %v762, %v865
    %v867 = vpop.f32.mrb[0].mxu0
    %868 = vdwg.mxu0
    %869 = vmatprep.subr.mxu0 0.0
    %v870 = vand.u32 %v500, 4294901760
    %871 = vmatpush1.msra.mxu0 %v870
    %872 = vmatprep.subr.mxu0 0.0
    %v873 = vand.u32 %v501, 4294901760
    %874 = vmatpush1.msra.mxu0 %v873
    %875 = vmatprep.subr.mxu0 0.0
    %v876 = vand.u32 %v502, 4294901760
    %877 = vmatpush1.msra.mxu0 %v876
    %878 = vmatprep.subr.mxu0 0.0
    %v879 = vand.u32 %v503, 4294901760
    %880 = vmatpush1.msra.mxu0 %v879
    %881 = vmatprep.subr.mxu0 0.0
    %v882 = vand.u32 %v504, 4294901760
    %883 = vmatpush1.msra.mxu0 %v882
    %884 = vmatprep.subr.mxu0 0.0
    %v885 = vand.u32 %v505, 4294901760
    %886 = vmatpush1.msra.mxu0 %v885
    %887 = vmatprep.subr.mxu0 0.0
    %v888 = vand.u32 %v506, 4294901760
    %889 = vmatpush1.msra.mxu0 %v888
    %890 = vmatprep.subr.mxu0 0.0
    %v891 = vand.u32 %v507, 4294901760
    %892 = vmatpush1.msra.mxu0 %v891
    %893 = vmatprep.subr.mxu0 0.0
    %v894 = vand.u32 %v508, 4294901760
    %895 = vmatpush1.msra.mxu0 %v894
    %896 = vmatprep.subr.mxu0 0.0
    %v897 = vand.u32 %v509, 4294901760
    %898 = vmatpush1.msra.mxu0 %v897
    %899 = vmatprep.subr.mxu0 0.0
    %v900 = vand.u32 %v510, 4294901760
    %901 = vmatpush1.msra.mxu0 %v900
    %902 = vmatprep.subr.mxu0 0.0
    %v903 = vand.u32 %v511, 4294901760
    %904 = vmatpush1.msra.mxu0 %v903
    %905 = vmatprep.subr.mxu0 0.0
    %v906 = vand.u32 %v512, 4294901760
    %907 = vmatpush1.msra.mxu0 %v906
    %908 = vmatprep.subr.mxu0 0.0
    %v909 = vand.u32 %v513, 4294901760
    %910 = vmatpush1.msra.mxu0 %v909
    %911 = vmatprep.subr.mxu0 0.0
    %v912 = vand.u32 %v514, 4294901760
    %913 = vmatpush1.msra.mxu0 %v912
    %914 = vmatprep.subr.mxu0 0.0
    %v915 = vand.u32 %v515, 4294901760
    %916 = vmatpush1.msra.mxu0 %v915
    %917 = vmatprep.subr.mxu0 0.0
    %918 = vmatpush1.msra.mxu0 0.0
    %919 = vmatprep.subr.mxu0 0.0
    %920 = vmatpush1.msra.mxu0 0.0
    %921 = vmatprep.subr.mxu0 0.0
    %922 = vmatpush1.msra.mxu0 0.0
    %923 = vmatprep.subr.mxu0 0.0
    %924 = vmatpush1.msra.mxu0 0.0
    %925 = vmatprep.subr.mxu0 0.0
    %926 = vmatpush1.msra.mxu0 0.0
    %927 = vmatprep.subr.mxu0 0.0
    %928 = vmatpush1.msra.mxu0 0.0
    %929 = vmatprep.subr.mxu0 0.0
    %930 = vmatpush1.msra.mxu0 0.0
    %931 = vmatprep.subr.mxu0 0.0
    %932 = vmatpush1.msra.mxu0 0.0
    %933 = vmatprep.subr.mxu0 0.0
    %934 = vmatpush1.msra.mxu0 0.0
    %935 = vmatprep.subr.mxu0 0.0
    %936 = vmatpush1.msra.mxu0 0.0
    %937 = vmatprep.subr.mxu0 0.0
    %938 = vmatpush1.msra.mxu0 0.0
    %939 = vmatprep.subr.mxu0 0.0
    %940 = vmatpush1.msra.mxu0 0.0
    %941 = vmatprep.subr.mxu0 0.0
    %942 = vmatpush1.msra.mxu0 0.0
    %943 = vmatprep.subr.mxu0 0.0
    %944 = vmatpush1.msra.mxu0 0.0
    %945 = vmatprep.subr.mxu0 0.0
    %946 = vmatpush1.msra.mxu0 0.0
    %947 = vmatprep.subr.mxu0 0.0
    %948 = vmatpush1.msra.mxu0 0.0
    %949 = vmatprep.mubr.f32.mxu0 0.0
    %v950 = vand.u32 %v499, 4294901760
    %v951 = vsub.f32 %v499, %v950
    %v952 = vand.u32 %v951, 4294901760
    %953 = vmatmul.mubr.f32.gmra.mrb[0].mxu0 %v952
    %v954 = vpop.f32.mrb[0].mxu0
    %v955 = vadd.f32 %v866, %v954
    %v956 = vpop.f32.mrb[0].mxu0
    %957 = vdwg.mxu0
    %958 = vmatprep.subr.mxu0 0.0
    %v959 = vand.u32 %v500, 4294901760
    %v960 = vsub.f32 %v500, %v959
    %v961 = vand.u32 %v960, 4294901760
    %962 = vmatpush1.msra.mxu0 %v961
    %963 = vmatprep.subr.mxu0 0.0
    %v964 = vand.u32 %v501, 4294901760
    %v965 = vsub.f32 %v501, %v964
    %v966 = vand.u32 %v965, 4294901760
    %967 = vmatpush1.msra.mxu0 %v966
    %968 = vmatprep.subr.mxu0 0.0
    %v969 = vand.u32 %v502, 4294901760
    %v970 = vsub.f32 %v502, %v969
    %v971 = vand.u32 %v970, 4294901760
    %972 = vmatpush1.msra.mxu0 %v971
    %973 = vmatprep.subr.mxu0 0.0
    %v974 = vand.u32 %v503, 4294901760
    %v975 = vsub.f32 %v503, %v974
    %v976 = vand.u32 %v975, 4294901760
    %977 = vmatpush1.msra.mxu0 %v976
    %978 = vmatprep.subr.mxu0 0.0
    %v979 = vand.u32 %v504, 4294901760
    %v980 = vsub.f32 %v504, %v979
    %v981 = vand.u32 %v980, 4294901760
    %982 = vmatpush1.msra.mxu0 %v981
    %983 = vmatprep.subr.mxu0 0.0
    %v984 = vand.u32 %v505, 4294901760
    %v985 = vsub.f32 %v505, %v984
    %v986 = vand.u32 %v985, 4294901760
    %987 = vmatpush1.msra.mxu0 %v986
    %988 = vmatprep.subr.mxu0 0.0
    %v989 = vand.u32 %v506, 4294901760
    %v990 = vsub.f32 %v506, %v989
    %v991 = vand.u32 %v990, 4294901760
    %992 = vmatpush1.msra.mxu0 %v991
    %993 = vmatprep.subr.mxu0 0.0
    %v994 = vand.u32 %v507, 4294901760
    %v995 = vsub.f32 %v507, %v994
    %v996 = vand.u32 %v995, 4294901760
    %997 = vmatpush1.msra.mxu0 %v996
    %998 = vmatprep.subr.mxu0 0.0
    %v999 = vand.u32 %v508, 4294901760
    %v1000 = vsub.f32 %v508, %v999
    %v1001 = vand.u32 %v1000, 4294901760
    %1002 = vmatpush1.msra.mxu0 %v1001
    %1003 = vmatprep.subr.mxu0 0.0
    %v1004 = vand.u32 %v509, 4294901760
    %v1005 = vsub.f32 %v509, %v1004
    %v1006 = vand.u32 %v1005, 4294901760
    %1007 = vmatpush1.msra.mxu0 %v1006
    %1008 = vmatprep.subr.mxu0 0.0
    %v1009 = vand.u32 %v510, 4294901760
    %v1010 = vsub.f32 %v510, %v1009
    %v1011 = vand.u32 %v1010, 4294901760
    %1012 = vmatpush1.msra.mxu0 %v1011
    %1013 = vmatprep.subr.mxu0 0.0
    %v1014 = vand.u32 %v511, 4294901760
    %v1015 = vsub.f32 %v511, %v1014
    %v1016 = vand.u32 %v1015, 4294901760
    %1017 = vmatpush1.msra.mxu0 %v1016
    %1018 = vmatprep.subr.mxu0 0.0
    %v1019 = vand.u32 %v512, 4294901760
    %v1020 = vsub.f32 %v512, %v1019
    %v1021 = vand.u32 %v1020, 4294901760
    %1022 = vmatpush1.msra.mxu0 %v1021
    %1023 = vmatprep.subr.mxu0 0.0
    %v1024 = vand.u32 %v513, 4294901760
    %v1025 = vsub.f32 %v513, %v1024
    %v1026 = vand.u32 %v1025, 4294901760
    %1027 = vmatpush1.msra.mxu0 %v1026
    %1028 = vmatprep.subr.mxu0 0.0
    %v1029 = vand.u32 %v514, 4294901760
    %v1030 = vsub.f32 %v514, %v1029
    %v1031 = vand.u32 %v1030, 4294901760
    %1032 = vmatpush1.msra.mxu0 %v1031
    %1033 = vmatprep.subr.mxu0 0.0
    %v1034 = vand.u32 %v515, 4294901760
    %v1035 = vsub.f32 %v515, %v1034
    %v1036 = vand.u32 %v1035, 4294901760
    %1037 = vmatpush1.msra.mxu0 %v1036
    %1038 = vmatprep.subr.mxu0 0.0
    %1039 = vmatpush1.msra.mxu0 0.0
    %1040 = vmatprep.subr.mxu0 0.0
    %1041 = vmatpush1.msra.mxu0 0.0
    %1042 = vmatprep.subr.mxu0 0.0
    %1043 = vmatpush1.msra.mxu0 0.0
    %1044 = vmatprep.subr.mxu0 0.0
    %1045 = vmatpush1.msra.mxu0 0.0
    %1046 = vmatprep.subr.mxu0 0.0
    %1047 = vmatpush1.msra.mxu0 0.0
    %1048 = vmatprep.subr.mxu0 0.0
    %1049 = vmatpush1.msra.mxu0 0.0
    %1050 = vmatprep.subr.mxu0 0.0
    %1051 = vmatpush1.msra.mxu0 0.0
    %1052 = vmatprep.subr.mxu0 0.0
    %1053 = vmatpush1.msra.mxu0 0.0
    %1054 = vmatprep.subr.mxu0 0.0
    %1055 = vmatpush1.msra.mxu0 0.0
    %1056 = vmatprep.subr.mxu0 0.0
    %1057 = vmatpush1.msra.mxu0 0.0
    %1058 = vmatprep.subr.mxu0 0.0
    %1059 = vmatpush1.msra.mxu0 0.0
    %1060 = vmatprep.subr.mxu0 0.0
    %1061 = vmatpush1.msra.mxu0 0.0
    %1062 = vmatprep.subr.mxu0 0.0
    %1063 = vmatpush1.msra.mxu0 0.0
    %1064 = vmatprep.subr.mxu0 0.0
    %1065 = vmatpush1.msra.mxu0 0.0
    %1066 = vmatprep.subr.mxu0 0.0
    %1067 = vmatpush1.msra.mxu0 0.0
    %1068 = vmatprep.subr.mxu0 0.0
    %1069 = vmatpush1.msra.mxu0 0.0
    %1070 = vmatprep.mubr.f32.mxu0 0.0
    %v1071 = vand.u32 %v499, 4294901760
    %1072 = vmatmul.mubr.f32.gmra.mrb[0].mxu0 %v1071
    %v1073 = vpop.f32.mrb[0].mxu0
    %v1074 = vadd.f32 %v955, %v1073
    %v1075 = vpop.f32.mrb[0].mxu0
    %1076 = vdwg.mxu0
    %1077 = vmatprep.subr.mxu0 0.0
    %v1078 = vand.u32 %v500, 4294901760
    %1079 = vmatpush1.msra.mxu0 %v1078
    %1080 = vmatprep.subr.mxu0 0.0
    %v1081 = vand.u32 %v501, 4294901760
    %1082 = vmatpush1.msra.mxu0 %v1081
    %1083 = vmatprep.subr.mxu0 0.0
    %v1084 = vand.u32 %v502, 4294901760
    %1085 = vmatpush1.msra.mxu0 %v1084
    %1086 = vmatprep.subr.mxu0 0.0
    %v1087 = vand.u32 %v503, 4294901760
    %1088 = vmatpush1.msra.mxu0 %v1087
    %1089 = vmatprep.subr.mxu0 0.0
    %v1090 = vand.u32 %v504, 4294901760
    %1091 = vmatpush1.msra.mxu0 %v1090
    %1092 = vmatprep.subr.mxu0 0.0
    %v1093 = vand.u32 %v505, 4294901760
    %1094 = vmatpush1.msra.mxu0 %v1093
    %1095 = vmatprep.subr.mxu0 0.0
    %v1096 = vand.u32 %v506, 4294901760
    %1097 = vmatpush1.msra.mxu0 %v1096
    %1098 = vmatprep.subr.mxu0 0.0
    %v1099 = vand.u32 %v507, 4294901760
    %1100 = vmatpush1.msra.mxu0 %v1099
    %1101 = vmatprep.subr.mxu0 0.0
    %v1102 = vand.u32 %v508, 4294901760
    %1103 = vmatpush1.msra.mxu0 %v1102
    %1104 = vmatprep.subr.mxu0 0.0
    %v1105 = vand.u32 %v509, 4294901760
    %1106 = vmatpush1.msra.mxu0 %v1105
    %1107 = vmatprep.subr.mxu0 0.0
    %v1108 = vand.u32 %v510, 4294901760
    %1109 = vmatpush1.msra.mxu0 %v1108
    %1110 = vmatprep.subr.mxu0 0.0
    %v1111 = vand.u32 %v511, 4294901760
    %1112 = vmatpush1.msra.mxu0 %v1111
    %1113 = vmatprep.subr.mxu0 0.0
    %v1114 = vand.u32 %v512, 4294901760
    %1115 = vmatpush1.msra.mxu0 %v1114
    %1116 = vmatprep.subr.mxu0 0.0
    %v1117 = vand.u32 %v513, 4294901760
    %1118 = vmatpush1.msra.mxu0 %v1117
    %1119 = vmatprep.subr.mxu0 0.0
    %v1120 = vand.u32 %v514, 4294901760
    %1121 = vmatpush1.msra.mxu0 %v1120
    %1122 = vmatprep.subr.mxu0 0.0
    %v1123 = vand.u32 %v515, 4294901760
    %1124 = vmatpush1.msra.mxu0 %v1123
    %1125 = vmatprep.subr.mxu0 0.0
    %1126 = vmatpush1.msra.mxu0 0.0
    %1127 = vmatprep.subr.mxu0 0.0
    %1128 = vmatpush1.msra.mxu0 0.0
    %1129 = vmatprep.subr.mxu0 0.0
    %1130 = vmatpush1.msra.mxu0 0.0
    %1131 = vmatprep.subr.mxu0 0.0
    %1132 = vmatpush1.msra.mxu0 0.0
    %1133 = vmatprep.subr.mxu0 0.0
    %1134 = vmatpush1.msra.mxu0 0.0
    %1135 = vmatprep.subr.mxu0 0.0
    %1136 = vmatpush1.msra.mxu0 0.0
    %1137 = vmatprep.subr.mxu0 0.0
    %1138 = vmatpush1.msra.mxu0 0.0
    %1139 = vmatprep.subr.mxu0 0.0
    %1140 = vmatpush1.msra.mxu0 0.0
    %1141 = vmatprep.subr.mxu0 0.0
    %1142 = vmatpush1.msra.mxu0 0.0
    %1143 = vmatprep.subr.mxu0 0.0
    %1144 = vmatpush1.msra.mxu0 0.0
    %1145 = vmatprep.subr.mxu0 0.0
    %1146 = vmatpush1.msra.mxu0 0.0
    %1147 = vmatprep.subr.mxu0 0.0
    %1148 = vmatpush1.msra.mxu0 0.0
    %1149 = vmatprep.subr.mxu0 0.0
    %1150 = vmatpush1.msra.mxu0 0.0
    %1151 = vmatprep.subr.mxu0 0.0
    %1152 = vmatpush1.msra.mxu0 0.0
    %1153 = vmatprep.subr.mxu0 0.0
    %1154 = vmatpush1.msra.mxu0 0.0
    %1155 = vmatprep.subr.mxu0 0.0
    %1156 = vmatpush1.msra.mxu0 0.0
    %1157 = vmatprep.mubr.f32.mxu0 0.0
    %v1158 = vand.u32 %v499, 4294901760
    %1159 = vmatmul.mubr.f32.gmra.mrb[0].mxu0 %v1158
    %v1160 = vpop.f32.mrb[0].mxu0
    %v1161 = vadd.f32 %v1074, %v1160
    %v1162 = vpop.f32.mrb[0].mxu0
    %1163 = vdwg.mxu0
    %vm1164 = vcmp.gt.f32.partialorder %v1161, 0.0
    %v1165 = vmul.f32 %v1161, 0.01
    %v1166 = vsel %vm1164, %v1161, %v1165
    %v1167 = vld [vmem:[%s5] sm:$0xff]
    %v1168 = vld [vmem:[%s5 + $0x8] sm:$0xff]
    %v1169 = vld [vmem:[%s5 + $0x10] sm:$0xff]
    %v1170 = vld [vmem:[%s5 + $0x18] sm:$0xff]
    %v1171 = vld [vmem:[%s5 + $0x20] sm:$0xff]
    %v1172 = vld [vmem:[%s5 + $0x28] sm:$0xff]
    %v1173 = vld [vmem:[%s5 + $0x30] sm:$0xff]
    %v1174 = vld [vmem:[%s5 + $0x38] sm:$0xff]
    %v1175 = vld [vmem:[%s5 + $0x40] sm:$0xff]
    %v1176 = vld [vmem:[%s5 + $0x48] sm:$0xff]
    %v1177 = vld [vmem:[%s5 + $0x50] sm:$0xff]
    %v1178 = vld [vmem:[%s5 + $0x58] sm:$0xff]
    %v1179 = vld [vmem:[%s5 + $0x60] sm:$0xff]
    %v1180 = vld [vmem:[%s5 + $0x68] sm:$0xff]
    %v1181 = vld [vmem:[%s5 + $0x70] sm:$0xff]
    %v1182 = vld [vmem:[%s5 + $0x78] sm:$0xff]
    %v1183 = vld [vmem:[%s6] sm:$0x1]
    %v1185 = vlaneseq
    %v1186 = vshrl.u32 %v1185, 7
    %v1187 = vsub.s32 0, %v1186
    %v1188 = vrot.slane %v1183, %v1187
    %1190 = vmatprep.subr.mxu0 0.0
    %v1191 = vand.u32 %v1167, 4294901760
    %1192 = vmatpush1.msra.mxu0 %v1191
    %1193 = vmatprep.subr.mxu0 0.0
    %v1194 = vand.u32 %v1168, 4294901760
    %1195 = vmatpush1.msra.mxu0 %v1194
    %1196 = vmatprep.subr.mxu0 0.0
    %v1197 = vand.u32 %v1169, 4294901760
    %1198 = vmatpush1.msra.mxu0 %v1197
    %1199 = vmatprep.subr.mxu0 0.0
    %v1200 = vand.u32 %v1170, 4294901760
    %1201 = vmatpush1.msra.mxu0 %v1200
    %1202 = vmatprep.subr.mxu0 0.0
    %v1203 = vand.u32 %v1171, 4294901760
    %1204 = vmatpush1.msra.mxu0 %v1203
    %1205 = vmatprep.subr.mxu0 0.0
    %v1206 = vand.u32 %v1172, 4294901760
    %1207 = vmatpush1.msra.mxu0 %v1206
    %1208 = vmatprep.subr.mxu0 0.0
    %v1209 = vand.u32 %v1173, 4294901760
    %1210 = vmatpush1.msra.mxu0 %v1209
    %1211 = vmatprep.subr.mxu0 0.0
    %v1212 = vand.u32 %v1174, 4294901760
    %1213 = vmatpush1.msra.mxu0 %v1212
    %1214 = vmatprep.subr.mxu0 0.0
    %v1215 = vand.u32 %v1175, 4294901760
    %1216 = vmatpush1.msra.mxu0 %v1215
    %1217 = vmatprep.subr.mxu0 0.0
    %v1218 = vand.u32 %v1176, 4294901760
    %1219 = vmatpush1.msra.mxu0 %v1218
    %1220 = vmatprep.subr.mxu0 0.0
    %v1221 = vand.u32 %v1177, 4294901760
    %1222 = vmatpush1.msra.mxu0 %v1221
    %1223 = vmatprep.subr.mxu0 0.0
    %v1224 = vand.u32 %v1178, 4294901760
    %1225 = vmatpush1.msra.mxu0 %v1224
    %1226 = vmatprep.subr.mxu0 0.0
    %v1227 = vand.u32 %v1179, 4294901760
    %1228 = vmatpush1.msra.mxu0 %v1227
    %1229 = vmatprep.subr.mxu0 0.0
    %v1230 = vand.u32 %v1180, 4294901760
    %1231 = vmatpush1.msra.mxu0 %v1230
    %1232 = vmatprep.subr.mxu0 0.0
    %v1233 = vand.u32 %v1181, 4294901760
    %1234 = vmatpush1.msra.mxu0 %v1233
    %1235 = vmatprep.subr.mxu0 0.0
    %v1236 = vand.u32 %v1182, 4294901760
    %1237 = vmatpush1.msra.mxu0 %v1236
    %1238 = vmatprep.subr.mxu0 0.0
    %1239 = vmatpush1.msra.mxu0 0.0
    %1240 = vmatprep.subr.mxu0 0.0
    %1241 = vmatpush1.msra.mxu0 0.0
    %1242 = vmatprep.subr.mxu0 0.0
    %1243 = vmatpush1.msra.mxu0 0.0
    %1244 = vmatprep.subr.mxu0 0.0
    %1245 = vmatpush1.msra.mxu0 0.0
    %1246 = vmatprep.subr.mxu0 0.0
    %1247 = vmatpush1.msra.mxu0 0.0
    %1248 = vmatprep.subr.mxu0 0.0
    %1249 = vmatpush1.msra.mxu0 0.0
    %1250 = vmatprep.subr.mxu0 0.0
    %1251 = vmatpush1.msra.mxu0 0.0
    %1252 = vmatprep.subr.mxu0 0.0
    %1253 = vmatpush1.msra.mxu0 0.0
    %1254 = vmatprep.subr.mxu0 0.0
    %1255 = vmatpush1.msra.mxu0 0.0
    %1256 = vmatprep.subr.mxu0 0.0
    %1257 = vmatpush1.msra.mxu0 0.0
    %1258 = vmatprep.subr.mxu0 0.0
    %1259 = vmatpush1.msra.mxu0 0.0
    %1260 = vmatprep.subr.mxu0 0.0
    %1261 = vmatpush1.msra.mxu0 0.0
    %1262 = vmatprep.subr.mxu0 0.0
    %1263 = vmatpush1.msra.mxu0 0.0
    %1264 = vmatprep.subr.mxu0 0.0
    %1265 = vmatpush1.msra.mxu0 0.0
    %1266 = vmatprep.subr.mxu0 0.0
    %1267 = vmatpush1.msra.mxu0 0.0
    %1268 = vmatprep.subr.mxu0 0.0
    %1269 = vmatpush1.msra.mxu0 0.0
    %1270 = vmatprep.mubr.f32.mxu0 0.0
    %v1271 = vand.u32 %v1166, 4294901760
    %v1272 = vsub.f32 %v1166, %v1271
    %v1273 = vand.u32 %v1272, 4294901760
    %v1274 = vsub.f32 %v1272, %v1273
    %v1275 = vand.u32 %v1274, 4294901760
    %1276 = vmatmul.mubr.f32.gmra.mrb[0].mxu0 %v1275
    %v1277 = vpop.f32.mrb[0].mxu0
    %v1278 = vadd.f32 %v1188, %v1277
    %v1279 = vpop.f32.mrb[0].mxu0
    %1280 = vdwg.mxu0
    %1281 = vmatprep.subr.mxu0 0.0
    %v1282 = vand.u32 %v1167, 4294901760
    %v1283 = vsub.f32 %v1167, %v1282
    %v1284 = vand.u32 %v1283, 4294901760
    %v1285 = vsub.f32 %v1283, %v1284
    %v1286 = vand.u32 %v1285, 4294901760
    %1287 = vmatpush1.msra.mxu0 %v1286
    %1288 = vmatprep.subr.mxu0 0.0
    %v1289 = vand.u32 %v1168, 4294901760
    %v1290 = vsub.f32 %v1168, %v1289
    %v1291 = vand.u32 %v1290, 4294901760
    %v1292 = vsub.f32 %v1290, %v1291
    %v1293 = vand.u32 %v1292, 4294901760
    %1294 = vmatpush1.msra.mxu0 %v1293
    %1295 = vmatprep.subr.mxu0 0.0
    %v1296 = vand.u32 %v1169, 4294901760
    %v1297 = vsub.f32 %v1169, %v1296
    %v1298 = vand.u32 %v1297, 4294901760
    %v1299 = vsub.f32 %v1297, %v1298
    %v1300 = vand.u32 %v1299, 4294901760
    %1301 = vmatpush1.msra.mxu0 %v1300
    %1302 = vmatprep.subr.mxu0 0.0
    %v1303 = vand.u32 %v1170, 4294901760
    %v1304 = vsub.f32 %v1170, %v1303
    %v1305 = vand.u32 %v1304, 4294901760
    %v1306 = vsub.f32 %v1304, %v1305
    %v1307 = vand.u32 %v1306, 4294901760
    %1308 = vmatpush1.msra.mxu0 %v1307
    %1309 = vmatprep.subr.mxu0 0.0
    %v1310 = vand.u32 %v1171, 4294901760
    %v1311 = vsub.f32 %v1171, %v1310
    %v1312 = vand.u32 %v1311, 4294901760
    %v1313 = vsub.f32 %v1311, %v1312
    %v1314 = vand.u32 %v1313, 4294901760
    %1315 = vmatpush1.msra.mxu0 %v1314
    %1316 = vmatprep.subr.mxu0 0.0
    %v1317 = vand.u32 %v1172, 4294901760
    %v1318 = vsub.f32 %v1172, %v1317
    %v1319 = vand.u32 %v1318, 4294901760
    %v1320 = vsub.f32 %v1318, %v1319
    %v1321 = vand.u32 %v1320, 4294901760
    %1322 = vmatpush1.msra.mxu0 %v1321
    %1323 = vmatprep.subr.mxu0 0.0
    %v1324 = vand.u32 %v1173, 4294901760
    %v1325 = vsub.f32 %v1173, %v1324
    %v1326 = vand.u32 %v1325, 4294901760
    %v1327 = vsub.f32 %v1325, %v1326
    %v1328 = vand.u32 %v1327, 4294901760
    %1329 = vmatpush1.msra.mxu0 %v1328
    %1330 = vmatprep.subr.mxu0 0.0
    %v1331 = vand.u32 %v1174, 4294901760
    %v1332 = vsub.f32 %v1174, %v1331
    %v1333 = vand.u32 %v1332, 4294901760
    %v1334 = vsub.f32 %v1332, %v1333
    %v1335 = vand.u32 %v1334, 4294901760
    %1336 = vmatpush1.msra.mxu0 %v1335
    %1337 = vmatprep.subr.mxu0 0.0
    %v1338 = vand.u32 %v1175, 4294901760
    %v1339 = vsub.f32 %v1175, %v1338
    %v1340 = vand.u32 %v1339, 4294901760
    %v1341 = vsub.f32 %v1339, %v1340
    %v1342 = vand.u32 %v1341, 4294901760
    %1343 = vmatpush1.msra.mxu0 %v1342
    %1344 = vmatprep.subr.mxu0 0.0
    %v1345 = vand.u32 %v1176, 4294901760
    %v1346 = vsub.f32 %v1176, %v1345
    %v1347 = vand.u32 %v1346, 4294901760
    %v1348 = vsub.f32 %v1346, %v1347
    %v1349 = vand.u32 %v1348, 4294901760
    %1350 = vmatpush1.msra.mxu0 %v1349
    %1351 = vmatprep.subr.mxu0 0.0
    %v1352 = vand.u32 %v1177, 4294901760
    %v1353 = vsub.f32 %v1177, %v1352
    %v1354 = vand.u32 %v1353, 4294901760
    %v1355 = vsub.f32 %v1353, %v1354
    %v1356 = vand.u32 %v1355, 4294901760
    %1357 = vmatpush1.msra.mxu0 %v1356
    %1358 = vmatprep.subr.mxu0 0.0
    %v1359 = vand.u32 %v1178, 4294901760
    %v1360 = vsub.f32 %v1178, %v1359
    %v1361 = vand.u32 %v1360, 4294901760
    %v1362 = vsub.f32 %v1360, %v1361
    %v1363 = vand.u32 %v1362, 4294901760
    %1364 = vmatpush1.msra.mxu0 %v1363
    %1365 = vmatprep.subr.mxu0 0.0
    %v1366 = vand.u32 %v1179, 4294901760
    %v1367 = vsub.f32 %v1179, %v1366
    %v1368 = vand.u32 %v1367, 4294901760
    %v1369 = vsub.f32 %v1367, %v1368
    %v1370 = vand.u32 %v1369, 4294901760
    %1371 = vmatpush1.msra.mxu0 %v1370
    %1372 = vmatprep.subr.mxu0 0.0
    %v1373 = vand.u32 %v1180, 4294901760
    %v1374 = vsub.f32 %v1180, %v1373
    %v1375 = vand.u32 %v1374, 4294901760
    %v1376 = vsub.f32 %v1374, %v1375
    %v1377 = vand.u32 %v1376, 4294901760
    %1378 = vmatpush1.msra.mxu0 %v1377
    %1379 = vmatprep.subr.mxu0 0.0
    %v1380 = vand.u32 %v1181, 4294901760
    %v1381 = vsub.f32 %v1181, %v1380
    %v1382 = vand.u32 %v1381, 4294901760
    %v1383 = vsub.f32 %v1381, %v1382
    %v1384 = vand.u32 %v1383, 4294901760
    %1385 = vmatpush1.msra.mxu0 %v1384
    %1386 = vmatprep.subr.mxu0 0.0
    %v1387 = vand.u32 %v1182, 4294901760
    %v1388 = vsub.f32 %v1182, %v1387
    %v1389 = vand.u32 %v1388, 4294901760
    %v1390 = vsub.f32 %v1388, %v1389
    %v1391 = vand.u32 %v1390, 4294901760
    %1392 = vmatpush1.msra.mxu0 %v1391
    %1393 = vmatprep.subr.mxu0 0.0
    %1394 = vmatpush1.msra.mxu0 0.0
    %1395 = vmatprep.subr.mxu0 0.0
    %1396 = vmatpush1.msra.mxu0 0.0
    %1397 = vmatprep.subr.mxu0 0.0
    %1398 = vmatpush1.msra.mxu0 0.0
    %1399 = vmatprep.subr.mxu0 0.0
    %1400 = vmatpush1.msra.mxu0 0.0
    %1401 = vmatprep.subr.mxu0 0.0
    %1402 = vmatpush1.msra.mxu0 0.0
    %1403 = vmatprep.subr.mxu0 0.0
    %1404 = vmatpush1.msra.mxu0 0.0
    %1405 = vmatprep.subr.mxu0 0.0
    %1406 = vmatpush1.msra.mxu0 0.0
    %1407 = vmatprep.subr.mxu0 0.0
    %1408 = vmatpush1.msra.mxu0 0.0
    %1409 = vmatprep.subr.mxu0 0.0
    %1410 = vmatpush1.msra.mxu0 0.0
    %1411 = vmatprep.subr.mxu0 0.0
    %1412 = vmatpush1.msra.mxu0 0.0
    %1413 = vmatprep.subr.mxu0 0.0
    %1414 = vmatpush1.msra.mxu0 0.0
    %1415 = vmatprep.subr.mxu0 0.0
    %1416 = vmatpush1.msra.mxu0 0.0
    %1417 = vmatprep.subr.mxu0 0.0
    %1418 = vmatpush1.msra.mxu0 0.0
    %1419 = vmatprep.subr.mxu0 0.0
    %1420 = vmatpush1.msra.mxu0 0.0
    %1421 = vmatprep.subr.mxu0 0.0
    %1422 = vmatpush1.msra.mxu0 0.0
    %1423 = vmatprep.subr.mxu0 0.0
    %1424 = vmatpush1.msra.mxu0 0.0
    %1425 = vmatprep.mubr.f32.mxu0 0.0
    %v1426 = vand.u32 %v1166, 4294901760
    %1427 = vmatmul.mubr.f32.gmra.mrb[0].mxu0 %v1426
    %v1428 = vpop.f32.mrb[0].mxu0
    %v1429 = vadd.f32 %v1278, %v1428
    %v1430 = vpop.f32.mrb[0].mxu0
    %1431 = vdwg.mxu0
    %1432 = vmatprep.subr.mxu0 0.0
    %v1433 = vand.u32 %v1167, 4294901760
    %v1434 = vsub.f32 %v1167, %v1433
    %1435 = vmatpush1.msra.mxu0 %v1434
    %1436 = vmatprep.subr.mxu0 0.0
    %v1437 = vand.u32 %v1168, 4294901760
    %v1438 = vsub.f32 %v1168, %v1437
    %1439 = vmatpush1.msra.mxu0 %v1438
    %1440 = vmatprep.subr.mxu0 0.0
    %v1441 = vand.u32 %v1169, 4294901760
    %v1442 = vsub.f32 %v1169, %v1441
    %1443 = vmatpush1.msra.mxu0 %v1442
    %1444 = vmatprep.subr.mxu0 0.0
    %v1445 = vand.u32 %v1170, 4294901760
    %v1446 = vsub.f32 %v1170, %v1445
    %1447 = vmatpush1.msra.mxu0 %v1446
    %1448 = vmatprep.subr.mxu0 0.0
    %v1449 = vand.u32 %v1171, 4294901760
    %v1450 = vsub.f32 %v1171, %v1449
    %1451 = vmatpush1.msra.mxu0 %v1450
    %1452 = vmatprep.subr.mxu0 0.0
    %v1453 = vand.u32 %v1172, 4294901760
    %v1454 = vsub.f32 %v1172, %v1453
    %1455 = vmatpush1.msra.mxu0 %v1454
    %1456 = vmatprep.subr.mxu0 0.0
    %v1457 = vand.u32 %v1173, 4294901760
    %v1458 = vsub.f32 %v1173, %v1457
    %1459 = vmatpush1.msra.mxu0 %v1458
    %1460 = vmatprep.subr.mxu0 0.0
    %v1461 = vand.u32 %v1174, 4294901760
    %v1462 = vsub.f32 %v1174, %v1461
    %1463 = vmatpush1.msra.mxu0 %v1462
    %1464 = vmatprep.subr.mxu0 0.0
    %v1465 = vand.u32 %v1175, 4294901760
    %v1466 = vsub.f32 %v1175, %v1465
    %1467 = vmatpush1.msra.mxu0 %v1466
    %1468 = vmatprep.subr.mxu0 0.0
    %v1469 = vand.u32 %v1176, 4294901760
    %v1470 = vsub.f32 %v1176, %v1469
    %1471 = vmatpush1.msra.mxu0 %v1470
    %1472 = vmatprep.subr.mxu0 0.0
    %v1473 = vand.u32 %v1177, 4294901760
    %v1474 = vsub.f32 %v1177, %v1473
    %1475 = vmatpush1.msra.mxu0 %v1474
    %1476 = vmatprep.subr.mxu0 0.0
    %v1477 = vand.u32 %v1178, 4294901760
    %v1478 = vsub.f32 %v1178, %v1477
    %1479 = vmatpush1.msra.mxu0 %v1478
    %1480 = vmatprep.subr.mxu0 0.0
    %v1481 = vand.u32 %v1179, 4294901760
    %v1482 = vsub.f32 %v1179, %v1481
    %1483 = vmatpush1.msra.mxu0 %v1482
    %1484 = vmatprep.subr.mxu0 0.0
    %v1485 = vand.u32 %v1180, 4294901760
    %v1486 = vsub.f32 %v1180, %v1485
    %1487 = vmatpush1.msra.mxu0 %v1486
    %1488 = vmatprep.subr.mxu0 0.0
    %v1489 = vand.u32 %v1181, 4294901760
    %v1490 = vsub.f32 %v1181, %v1489
    %1491 = vmatpush1.msra.mxu0 %v1490
    %1492 = vmatprep.subr.mxu0 0.0
    %v1493 = vand.u32 %v1182, 4294901760
    %v1494 = vsub.f32 %v1182, %v1493
    %1495 = vmatpush1.msra.mxu0 %v1494
    %1496 = vmatprep.subr.mxu0 0.0
    %1497 = vmatpush1.msra.mxu0 0.0
    %1498 = vmatprep.subr.mxu0 0.0
    %1499 = vmatpush1.msra.mxu0 0.0
    %1500 = vmatprep.subr.mxu0 0.0
    %1501 = vmatpush1.msra.mxu0 0.0
    %1502 = vmatprep.subr.mxu0 0.0
    %1503 = vmatpush1.msra.mxu0 0.0
    %1504 = vmatprep.subr.mxu0 0.0
    %1505 = vmatpush1.msra.mxu0 0.0
    %1506 = vmatprep.subr.mxu0 0.0
    %1507 = vmatpush1.msra.mxu0 0.0
    %1508 = vmatprep.subr.mxu0 0.0
    %1509 = vmatpush1.msra.mxu0 0.0
    %1510 = vmatprep.subr.mxu0 0.0
    %1511 = vmatpush1.msra.mxu0 0.0
    %1512 = vmatprep.subr.mxu0 0.0
    %1513 = vmatpush1.msra.mxu0 0.0
    %1514 = vmatprep.subr.mxu0 0.0
    %1515 = vmatpush1.msra.mxu0 0.0
    %1516 = vmatprep.subr.mxu0 0.0
    %1517 = vmatpush1.msra.mxu0 0.0
    %1518 = vmatprep.subr.mxu0 0.0
    %1519 = vmatpush1.msra.mxu0 0.0
    %1520 = vmatprep.subr.mxu0 0.0
    %1521 = vmatpush1.msra.mxu0 0.0
    %1522 = vmatprep.subr.mxu0 0.0
    %1523 = vmatpush1.msra.mxu0 0.0
    %1524 = vmatprep.subr.mxu0 0.0
    %1525 = vmatpush1.msra.mxu0 0.0
    %1526 = vmatprep.subr.mxu0 0.0
    %1527 = vmatpush1.msra.mxu0 0.0
    %1528 = vmatprep.mubr.f32.mxu0 0.0
    %v1529 = vand.u32 %v1166, 4294901760
    %v1530 = vsub.f32 %v1166, %v1529
    %1531 = vmatmul.mubr.f32.gmra.mrb[0].mxu0 %v1530
    %v1532 = vpop.f32.mrb[0].mxu0
    %v1533 = vadd.f32 %v1429, %v1532
    %v1534 = vpop.f32.mrb[0].mxu0
    %1535 = vdwg.mxu0
    %1536 = vmatprep.subr.mxu0 0.0
    %v1537 = vand.u32 %v1167, 4294901760
    %1538 = vmatpush1.msra.mxu0 %v1537
    %1539 = vmatprep.subr.mxu0 0.0
    %v1540 = vand.u32 %v1168, 4294901760
    %1541 = vmatpush1.msra.mxu0 %v1540
    %1542 = vmatprep.subr.mxu0 0.0
    %v1543 = vand.u32 %v1169, 4294901760
    %1544 = vmatpush1.msra.mxu0 %v1543
    %1545 = vmatprep.subr.mxu0 0.0
    %v1546 = vand.u32 %v1170, 4294901760
    %1547 = vmatpush1.msra.mxu0 %v1546
    %1548 = vmatprep.subr.mxu0 0.0
    %v1549 = vand.u32 %v1171, 4294901760
    %1550 = vmatpush1.msra.mxu0 %v1549
    %1551 = vmatprep.subr.mxu0 0.0
    %v1552 = vand.u32 %v1172, 4294901760
    %1553 = vmatpush1.msra.mxu0 %v1552
    %1554 = vmatprep.subr.mxu0 0.0
    %v1555 = vand.u32 %v1173, 4294901760
    %1556 = vmatpush1.msra.mxu0 %v1555
    %1557 = vmatprep.subr.mxu0 0.0
    %v1558 = vand.u32 %v1174, 4294901760
    %1559 = vmatpush1.msra.mxu0 %v1558
    %1560 = vmatprep.subr.mxu0 0.0
    %v1561 = vand.u32 %v1175, 4294901760
    %1562 = vmatpush1.msra.mxu0 %v1561
    %1563 = vmatprep.subr.mxu0 0.0
    %v1564 = vand.u32 %v1176, 4294901760
    %1565 = vmatpush1.msra.mxu0 %v1564
    %1566 = vmatprep.subr.mxu0 0.0
    %v1567 = vand.u32 %v1177, 4294901760
    %1568 = vmatpush1.msra.mxu0 %v1567
    %1569 = vmatprep.subr.mxu0 0.0
    %v1570 = vand.u32 %v1178, 4294901760
    %1571 = vmatpush1.msra.mxu0 %v1570
    %1572 = vmatprep.subr.mxu0 0.0
    %v1573 = vand.u32 %v1179, 4294901760
    %1574 = vmatpush1.msra.mxu0 %v1573
    %1575 = vmatprep.subr.mxu0 0.0
    %v1576 = vand.u32 %v1180, 4294901760
    %1577 = vmatpush1.msra.mxu0 %v1576
    %1578 = vmatprep.subr.mxu0 0.0
    %v1579 = vand.u32 %v1181, 4294901760
    %1580 = vmatpush1.msra.mxu0 %v1579
    %1581 = vmatprep.subr.mxu0 0.0
    %v1582 = vand.u32 %v1182, 4294901760
    %1583 = vmatpush1.msra.mxu0 %v1582
    %1584 = vmatprep.subr.mxu0 0.0
    %1585 = vmatpush1.msra.mxu0 0.0
    %1586 = vmatprep.subr.mxu0 0.0
    %1587 = vmatpush1.msra.mxu0 0.0
    %1588 = vmatprep.subr.mxu0 0.0
    %1589 = vmatpush1.msra.mxu0 0.0
    %1590 = vmatprep.subr.mxu0 0.0
    %1591 = vmatpush1.msra.mxu0 0.0
    %1592 = vmatprep.subr.mxu0 0.0
    %1593 = vmatpush1.msra.mxu0 0.0
    %1594 = vmatprep.subr.mxu0 0.0
    %1595 = vmatpush1.msra.mxu0 0.0
    %1596 = vmatprep.subr.mxu0 0.0
    %1597 = vmatpush1.msra.mxu0 0.0
    %1598 = vmatprep.subr.mxu0 0.0
    %1599 = vmatpush1.msra.mxu0 0.0
    %1600 = vmatprep.subr.mxu0 0.0
    %1601 = vmatpush1.msra.mxu0 0.0
    %1602 = vmatprep.subr.mxu0 0.0
    %1603 = vmatpush1.msra.mxu0 0.0
    %1604 = vmatprep.subr.mxu0 0.0
    %1605 = vmatpush1.msra.mxu0 0.0
    %1606 = vmatprep.subr.mxu0 0.0
    %1607 = vmatpush1.msra.mxu0 0.0
    %1608 = vmatprep.subr.mxu0 0.0
    %1609 = vmatpush1.msra.mxu0 0.0
    %1610 = vmatprep.subr.mxu0 0.0
    %1611 = vmatpush1.msra.mxu0 0.0
    %1612 = vmatprep.subr.mxu0 0.0
    %1613 = vmatpush1.msra.mxu0 0.0
    %1614 = vmatprep.subr.mxu0 0.0
    %1615 = vmatpush1.msra.mxu0 0.0
    %1616 = vmatprep.mubr.f32.mxu0 0.0
    %v1617 = vand.u32 %v1166, 4294901760
    %v1618 = vsub.f32 %v1166, %v1617
    %v1619 = vand.u32 %v1618, 4294901760
    %1620 = vmatmul.mubr.f32.gmra.mrb[0].mxu0 %v1619
    %v1621 = vpop.f32.mrb[0].mxu0
    %v1622 = vadd.f32 %v1533, %v1621
    %v1623 = vpop.f32.mrb[0].mxu0
    %1624 = vdwg.mxu0
    %1625 = vmatprep.subr.mxu0 0.0
    %v1626 = vand.u32 %v1167, 4294901760
    %v1627 = vsub.f32 %v1167, %v1626
    %v1628 = vand.u32 %v1627, 4294901760
    %1629 = vmatpush1.msra.mxu0 %v1628
    %1630 = vmatprep.subr.mxu0 0.0
    %v1631 = vand.u32 %v1168, 4294901760
    %v1632 = vsub.f32 %v1168, %v1631
    %v1633 = vand.u32 %v1632, 4294901760
    %1634 = vmatpush1.msra.mxu0 %v1633
    %1635 = vmatprep.subr.mxu0 0.0
    %v1636 = vand.u32 %v1169, 4294901760
    %v1637 = vsub.f32 %v1169, %v1636
    %v1638 = vand.u32 %v1637, 4294901760
    %1639 = vmatpush1.msra.mxu0 %v1638
    %1640 = vmatprep.subr.mxu0 0.0
    %v1641 = vand.u32 %v1170, 4294901760
    %v1642 = vsub.f32 %v1170, %v1641
    %v1643 = vand.u32 %v1642, 4294901760
    %1644 = vmatpush1.msra.mxu0 %v1643
    %1645 = vmatprep.subr.mxu0 0.0
    %v1646 = vand.u32 %v1171, 4294901760
    %v1647 = vsub.f32 %v1171, %v1646
    %v1648 = vand.u32 %v1647, 4294901760
    %1649 = vmatpush1.msra.mxu0 %v1648
    %1650 = vmatprep.subr.mxu0 0.0
    %v1651 = vand.u32 %v1172, 4294901760
    %v1652 = vsub.f32 %v1172, %v1651
    %v1653 = vand.u32 %v1652, 4294901760
    %1654 = vmatpush1.msra.mxu0 %v1653
    %1655 = vmatprep.subr.mxu0 0.0
    %v1656 = vand.u32 %v1173, 4294901760
    %v1657 = vsub.f32 %v1173, %v1656
    %v1658 = vand.u32 %v1657, 4294901760
    %1659 = vmatpush1.msra.mxu0 %v1658
    %1660 = vmatprep.subr.mxu0 0.0
    %v1661 = vand.u32 %v1174, 4294901760
    %v1662 = vsub.f32 %v1174, %v1661
    %v1663 = vand.u32 %v1662, 4294901760
    %1664 = vmatpush1.msra.mxu0 %v1663
    %1665 = vmatprep.subr.mxu0 0.0
    %v1666 = vand.u32 %v1175, 4294901760
    %v1667 = vsub.f32 %v1175, %v1666
    %v1668 = vand.u32 %v1667, 4294901760
    %1669 = vmatpush1.msra.mxu0 %v1668
    %1670 = vmatprep.subr.mxu0 0.0
    %v1671 = vand.u32 %v1176, 4294901760
    %v1672 = vsub.f32 %v1176, %v1671
    %v1673 = vand.u32 %v1672, 4294901760
    %1674 = vmatpush1.msra.mxu0 %v1673
    %1675 = vmatprep.subr.mxu0 0.0
    %v1676 = vand.u32 %v1177, 4294901760
    %v1677 = vsub.f32 %v1177, %v1676
    %v1678 = vand.u32 %v1677, 4294901760
    %1679 = vmatpush1.msra.mxu0 %v1678
    %1680 = vmatprep.subr.mxu0 0.0
    %v1681 = vand.u32 %v1178, 4294901760
    %v1682 = vsub.f32 %v1178, %v1681
    %v1683 = vand.u32 %v1682, 4294901760
    %1684 = vmatpush1.msra.mxu0 %v1683
    %1685 = vmatprep.subr.mxu0 0.0
    %v1686 = vand.u32 %v1179, 4294901760
    %v1687 = vsub.f32 %v1179, %v1686
    %v1688 = vand.u32 %v1687, 4294901760
    %1689 = vmatpush1.msra.mxu0 %v1688
    %1690 = vmatprep.subr.mxu0 0.0
    %v1691 = vand.u32 %v1180, 4294901760
    %v1692 = vsub.f32 %v1180, %v1691
    %v1693 = vand.u32 %v1692, 4294901760
    %1694 = vmatpush1.msra.mxu0 %v1693
    %1695 = vmatprep.subr.mxu0 0.0
    %v1696 = vand.u32 %v1181, 4294901760
    %v1697 = vsub.f32 %v1181, %v1696
    %v1698 = vand.u32 %v1697, 4294901760
    %1699 = vmatpush1.msra.mxu0 %v1698
    %1700 = vmatprep.subr.mxu0 0.0
    %v1701 = vand.u32 %v1182, 4294901760
    %v1702 = vsub.f32 %v1182, %v1701
    %v1703 = vand.u32 %v1702, 4294901760
    %1704 = vmatpush1.msra.mxu0 %v1703
    %1705 = vmatprep.subr.mxu0 0.0
    %1706 = vmatpush1.msra.mxu0 0.0
    %1707 = vmatprep.subr.mxu0 0.0
    %1708 = vmatpush1.msra.mxu0 0.0
    %1709 = vmatprep.subr.mxu0 0.0
    %1710 = vmatpush1.msra.mxu0 0.0
    %1711 = vmatprep.subr.mxu0 0.0
    %1712 = vmatpush1.msra.mxu0 0.0
    %1713 = vmatprep.subr.mxu0 0.0
    %1714 = vmatpush1.msra.mxu0 0.0
    %1715 = vmatprep.subr.mxu0 0.0
    %1716 = vmatpush1.msra.mxu0 0.0
    %1717 = vmatprep.subr.mxu0 0.0
    %1718 = vmatpush1.msra.mxu0 0.0
    %1719 = vmatprep.subr.mxu0 0.0
    %1720 = vmatpush1.msra.mxu0 0.0
    %1721 = vmatprep.subr.mxu0 0.0
    %1722 = vmatpush1.msra.mxu0 0.0
    %1723 = vmatprep.subr.mxu0 0.0
    %1724 = vmatpush1.msra.mxu0 0.0
    %1725 = vmatprep.subr.mxu0 0.0
    %1726 = vmatpush1.msra.mxu0 0.0
    %1727 = vmatprep.subr.mxu0 0.0
    %1728 = vmatpush1.msra.mxu0 0.0
    %1729 = vmatprep.subr.mxu0 0.0
    %1730 = vmatpush1.msra.mxu0 0.0
    %1731 = vmatprep.subr.mxu0 0.0
    %1732 = vmatpush1.msra.mxu0 0.0
    %1733 = vmatprep.subr.mxu0 0.0
    %1734 = vmatpush1.msra.mxu0 0.0
    %1735 = vmatprep.subr.mxu0 0.0
    %1736 = vmatpush1.msra.mxu0 0.0
    %1737 = vmatprep.mubr.f32.mxu0 0.0
    %v1738 = vand.u32 %v1166, 4294901760
    %1739 = vmatmul.mubr.f32.gmra.mrb[0].mxu0 %v1738
    %v1740 = vpop.f32.mrb[0].mxu0
    %v1741 = vadd.f32 %v1622, %v1740
    %v1742 = vpop.f32.mrb[0].mxu0
    %1743 = vdwg.mxu0
    %1744 = vmatprep.subr.mxu0 0.0
    %v1745 = vand.u32 %v1167, 4294901760
    %1746 = vmatpush1.msra.mxu0 %v1745
    %1747 = vmatprep.subr.mxu0 0.0
    %v1748 = vand.u32 %v1168, 4294901760
    %1749 = vmatpush1.msra.mxu0 %v1748
    %1750 = vmatprep.subr.mxu0 0.0
    %v1751 = vand.u32 %v1169, 4294901760
    %1752 = vmatpush1.msra.mxu0 %v1751
    %1753 = vmatprep.subr.mxu0 0.0
    %v1754 = vand.u32 %v1170, 4294901760
    %1755 = vmatpush1.msra.mxu0 %v1754
    %1756 = vmatprep.subr.mxu0 0.0
    %v1757 = vand.u32 %v1171, 4294901760
    %1758 = vmatpush1.msra.mxu0 %v1757
    %1759 = vmatprep.subr.mxu0 0.0
    %v1760 = vand.u32 %v1172, 4294901760
    %1761 = vmatpush1.msra.mxu0 %v1760
    %1762 = vmatprep.subr.mxu0 0.0
    %v1763 = vand.u32 %v1173, 4294901760
    %1764 = vmatpush1.msra.mxu0 %v1763
    %1765 = vmatprep.subr.mxu0 0.0
    %v1766 = vand.u32 %v1174, 4294901760
    %1767 = vmatpush1.msra.mxu0 %v1766
    %1768 = vmatprep.subr.mxu0 0.0
    %v1769 = vand.u32 %v1175, 4294901760
    %1770 = vmatpush1.msra.mxu0 %v1769
    %1771 = vmatprep.subr.mxu0 0.0
    %v1772 = vand.u32 %v1176, 4294901760
    %1773 = vmatpush1.msra.mxu0 %v1772
    %1774 = vmatprep.subr.mxu0 0.0
    %v1775 = vand.u32 %v1177, 4294901760
    %1776 = vmatpush1.msra.mxu0 %v1775
    %1777 = vmatprep.subr.mxu0 0.0
    %v1778 = vand.u32 %v1178, 4294901760
    %1779 = vmatpush1.msra.mxu0 %v1778
    %1780 = vmatprep.subr.mxu0 0.0
    %v1781 = vand.u32 %v1179, 4294901760
    %1782 = vmatpush1.msra.mxu0 %v1781
    %1783 = vmatprep.subr.mxu0 0.0
    %v1784 = vand.u32 %v1180, 4294901760
    %1785 = vmatpush1.msra.mxu0 %v1784
    %1786 = vmatprep.subr.mxu0 0.0
    %v1787 = vand.u32 %v1181, 4294901760
    %1788 = vmatpush1.msra.mxu0 %v1787
    %1789 = vmatprep.subr.mxu0 0.0
    %v1790 = vand.u32 %v1182, 4294901760
    %1791 = vmatpush1.msra.mxu0 %v1790
    %1792 = vmatprep.subr.mxu0 0.0
    %1793 = vmatpush1.msra.mxu0 0.0
    %1794 = vmatprep.subr.mxu0 0.0
    %1795 = vmatpush1.msra.mxu0 0.0
    %1796 = vmatprep.subr.mxu0 0.0
    %1797 = vmatpush1.msra.mxu0 0.0
    %1798 = vmatprep.subr.mxu0 0.0
    %1799 = vmatpush1.msra.mxu0 0.0
    %1800 = vmatprep.subr.mxu0 0.0
    %1801 = vmatpush1.msra.mxu0 0.0
    %1802 = vmatprep.subr.mxu0 0.0
    %1803 = vmatpush1.msra.mxu0 0.0
    %1804 = vmatprep.subr.mxu0 0.0
    %1805 = vmatpush1.msra.mxu0 0.0
    %1806 = vmatprep.subr.mxu0 0.0
    %1807 = vmatpush1.msra.mxu0 0.0
    %1808 = vmatprep.subr.mxu0 0.0
    %1809 = vmatpush1.msra.mxu0 0.0
    %1810 = vmatprep.subr.mxu0 0.0
    %1811 = vmatpush1.msra.mxu0 0.0
    %1812 = vmatprep.subr.mxu0 0.0
    %1813 = vmatpush1.msra.mxu0 0.0
    %1814 = vmatprep.subr.mxu0 0.0
    %1815 = vmatpush1.msra.mxu0 0.0
    %1816 = vmatprep.subr.mxu0 0.0
    %1817 = vmatpush1.msra.mxu0 0.0
    %1818 = vmatprep.subr.mxu0 0.0
    %1819 = vmatpush1.msra.mxu0 0.0
    %1820 = vmatprep.subr.mxu0 0.0
    %1821 = vmatpush1.msra.mxu0 0.0
    %1822 = vmatprep.subr.mxu0 0.0
    %1823 = vmatpush1.msra.mxu0 0.0
    %1824 = vmatprep.mubr.f32.mxu0 0.0
    %v1825 = vand.u32 %v1166, 4294901760
    %1826 = vmatmul.mubr.f32.gmra.mrb[0].mxu0 %v1825
    %v1827 = vpop.f32.mrb[0].mxu0
    %v1828 = vadd.f32 %v1741, %v1827
    %v1829 = vpop.f32.mrb[0].mxu0
    %1830 = vdwg.mxu0
    %vm1831 = vcmask 31744
    %1832 = vst.msk [vmem:[%s7] sm:$0xff] %vm1831, %v1828
    // Predicated region
    $region34: #{tpu_custom_call.1} parent=1 // pred_check
      _
    $region35: #{tpu_custom_call.1} parent=1 // pred_check_branch
      %1834 = sbr.rel (0) target = $region37
    $region36: #{tpu_custom_call.1} parent=1 // pred_region
      _
    $region37: #{tpu_custom_call.1} parent=1 // pred_fallthru
      _
    // Predicated region
    $region38: #{tpu_custom_call.1} parent=1 // pred_check
      _
    $region39: #{tpu_custom_call.1} parent=1 // pred_check_branch
      %1836 = sbr.rel (0) target = $region41
    $region40: #{tpu_custom_call.1} parent=1 // pred_region
      _
    $region41: #{tpu_custom_call.1} parent=1 // pred_fallthru
      _
    %1837 = vsyncpa [#allocation3], 1

</llo_original>
